<compile_context>
chip_gen: v7x
topology: tpu7x:2x2x1
jax: 0.10.0
libtpu: 0.0.40
codegen_flags: <defaults>
</compile_context>

<pallas_src>
import math

import jax
import jax.numpy as jnp
from jax.experimental import pallas as pl
from jax.experimental.pallas import tpu as pltpu

# Model dimensions (small, consistent with the module's forward semantics).
B = 2          # batch
T = 8          # time
D = 32         # model size ("size" in the module)
H = 4          # attention heads
DK = D // H    # head dim
DFF = 64       # feed-forward hidden dim
EPS = 1e-12    # LayerNorm eps (matches nn.LayerNorm(size, eps=1e-12))
NEG_INF = -1e30  # masked-fill value; safe because everything stays float32


def _layer_norm(v, gamma, beta):
    mu = jnp.mean(v, axis=-1, keepdims=True)
    var = jnp.mean((v - mu) ** 2, axis=-1, keepdims=True)
    return (v - mu) * jax.lax.rsqrt(var + EPS) * gamma + beta


def encoder_layer_kernel(
    x_ref, mask_ref,
    g1_ref, bn1_ref, g2_ref, bn2_ref,       # LayerNorm (mha / ff) gamma & beta, (1, D)
    wqkv_ref, bqkv_ref,                     # fused QKV projection (D, 3D), (1, 3D)
    wo_ref, bo_ref,                         # attention output projection (D, D), (1, D)
    w1_ref, b1_ref, w2_ref, b2_ref,         # feed-forward (D, DFF), (1, DFF), (DFF, D), (1, D)
    o_ref,                                  # (bb, 1, T*D) lane-dense output slab
):
    bb = x_ref.shape[0]                     # batch elements handled this grid step
    x = x_ref[...].reshape(bb * T, D)       # (bb*T, D)  residual input
    mask_f = mask_ref[...]                  # (bb, 1, T) key-padding mask (1 = keep)

    # ---- sub-block 1: pre-norm + multi-head self-attention + residual ----
    xn = _layer_norm(x, g1_ref[...], bn1_ref[...])

    # Fused QKV projection: weights already contraction-aligned (in, out).
    qkv = jnp.dot(xn, wqkv_ref[...], preferred_element_type=jnp.float32) + bqkv_ref[...]
    q = qkv[:, 0 * D:1 * D]
    k = qkv[:, 1 * D:2 * D]
    v = qkv[:, 2 * D:3 * D]

    # Arrange per-(batch, head) tiles along one leading axis, then run the whole
    # attention as two batched contractions + one vectorized softmax.
    def split_heads(m):                     # (bb*T, D) -> (bb*H, T, DK)
        return jnp.stack(
            [m[b * T:(b + 1) * T, h * DK:(h + 1) * DK]
             for b in range(bb) for h in range(H)],
            axis=0)

    qh = split_heads(q)
    kh = split_heads(k)
    vh = split_heads(v)
    mask_bh = jnp.stack([mask_f[b] for b in range(bb) for _ in range(H)], axis=0)  # (bb*H, 1, T)
    keep_bh = mask_bh > 0.5

    scale = 1.0 / math.sqrt(DK)
    scores = jnp.einsum('nqd,nkd->nqk', qh, kh,
                        preferred_element_type=jnp.float32) * scale   # (bb*H, T, T)
    scores = jnp.where(keep_bh, scores, NEG_INF)                      # masked_fill(-inf)
    smax = jnp.max(scores, axis=-1, keepdims=True)
    e = jnp.exp(scores - smax)
    denom = jnp.sum(e, axis=-1, keepdims=True)
    attn = e * pl.reciprocal(denom, approx=True)                      # divide -> EUP
    attn = jnp.where(keep_bh, attn, 0.0)                              # post-softmax masked_fill(0)
    ctx_bh = jnp.einsum('nqk,nkd->nqd', attn, vh,
                        preferred_element_type=jnp.float32)           # (bb*H, T, DK)

    # Merge heads back: (bb*H, T, DK) -> (bb*T, D)
    ctx = jnp.concatenate(
        [jnp.concatenate([ctx_bh[b * H + h] for h in range(H)], axis=-1)   # (T, D)
         for b in range(bb)],
        axis=0)

    att_out = jnp.dot(ctx, wo_ref[...], preferred_element_type=jnp.float32) + bo_ref[...]
    x1 = x + att_out                        # residual add (dropout = identity)

    # ---- sub-block 2: pre-norm + position-wise feed-forward + residual ----
    xn2 = _layer_norm(x1, g2_ref[...], bn2_ref[...])
    hidden = jnp.maximum(
        jnp.dot(xn2, w1_ref[...], preferred_element_type=jnp.float32) + b1_ref[...], 0.0)
    ff = jnp.dot(hidden, w2_ref[...], preferred_element_type=jnp.float32) + b2_ref[...]
    out = x1 + ff                           # (bb*T, D)

    # Lane-dense store: pack each sequence into one (1, T*D) = (1, 256) slab.
    packed = jnp.stack(
        [jnp.concatenate([out[b * T + t:b * T + t + 1, :] for t in range(T)], axis=-1)
         for b in range(bb)],
        axis=0)                             # (bb, 1, T*D)
    o_ref[...] = packed.astype(o_ref.dtype)


def conformer_encoder_layer(x, mask, params, *, batch_parallel=None):
    """x: (B, T, D) f32, mask: (B, 1, T) f32 -> (out, mask, fake_cnn_cache)."""
    Bx, Tx, Dx = x.shape
    assert (Tx, Dx) == (T, D)

    if batch_parallel is None:
        # Only dual-TensorCore v7x benefits from keeping the batch axis as a
        # parallel grid axis; single-TC v5e/v6e run one collapsed grid step.
        kind = jax.devices()[0].device_kind.lower()
        batch_parallel = ("v7" in kind) or ("7x" in kind)
    bb = 1 if (batch_parallel and Bx > 1) else Bx
    grid = (Bx // bb,)

    def full_spec(shape):
        # Whole-array block, same block every grid step (weights / biases).
        return pl.BlockSpec(shape, lambda b, _n=len(shape): (0,) * _n)

    in_specs = [
        pl.BlockSpec((bb, Tx, Dx), lambda b: (b, 0, 0)),   # x per batch block
        pl.BlockSpec((bb, 1, Tx), lambda b: (b, 0, 0)),    # mask per batch block
        full_spec((1, D)), full_spec((1, D)),              # norm_mha gamma/beta
        full_spec((1, D)), full_spec((1, D)),              # norm_ff gamma/beta
        full_spec((D, 3 * D)), full_spec((1, 3 * D)),      # fused Wqkv, bqkv (pre-transposed)
        full_spec((D, D)), full_spec((1, D)),              # Wo, bo (pre-transposed)
        full_spec((D, DFF)), full_spec((1, DFF)),          # W1, b1 (pre-transposed)
        full_spec((DFF, D)), full_spec((1, D)),            # W2, b2 (pre-transposed)
    ]

    out_flat = pl.pallas_call(
        encoder_layer_kernel,
        out_shape=jax.ShapeDtypeStruct((Bx, 1, Tx * Dx), x.dtype),
        grid_spec=pltpu.PrefetchScalarGridSpec(
            num_scalar_prefetch=0,
            grid=grid,
            in_specs=in_specs,
            out_specs=pl.BlockSpec((bb, 1, Tx * Dx), lambda b: (b, 0, 0)),
        ),
        compiler_params=pltpu.CompilerParams(
            dimension_semantics=("parallel",) if batch_parallel else ("arbitrary",),
        ),
    )(x, mask, *params)

    out = out_flat.reshape(Bx, Tx, Dx)
    # Module returns new_cnn_cache = tensor([0.0]) when conv_module is None.
    fake_cnn_cache = jnp.array([0.0], dtype=x.dtype)
    return out, mask, fake_cnn_cache


def init_params(key):
    ks = jax.random.split(key, 6)
    s = 0.05

    def lin(k, in_dim, out_dim):
        # Weights stored pre-transposed as (in_dim, out_dim).
        kw, kb = jax.random.split(k)
        w = jax.random.normal(kw, (in_dim, out_dim), jnp.float32) * s
        b = jax.random.normal(kb, (1, out_dim), jnp.float32) * s
        return w, b

    g1 = jnp.ones((1, D), jnp.float32)
    bn1 = jnp.zeros((1, D), jnp.float32)
    g2 = jnp.ones((1, D), jnp.float32)
    bn2 = jnp.zeros((1, D), jnp.float32)
    wq, bq = lin(ks[0], D, D)
    wk, bk = lin(ks[1], D, D)
    wv, bv = lin(ks[2], D, D)
    wqkv = jnp.concatenate([wq, wk, wv], axis=1)   # (D, 3D)
    bqkv = jnp.concatenate([bq, bk, bv], axis=1)   # (1, 3D)
    wo, bo = lin(ks[3], D, D)
    w1, b1 = lin(ks[4], D, DFF)
    w2, b2 = lin(ks[5], DFF, D)
    return (g1, bn1, g2, bn2, wqkv, bqkv, wo, bo, w1, b1, w2, b2)


def reference_layer(x, mask, params):
    """Pure-JAX reference of the same forward pass (for correctness check)."""
    g1, bn1, g2, bn2, wqkv, bqkv, wo, bo, w1, b1, w2, b2 = params

    def ln(v, g, bt):
        mu = v.mean(-1, keepdims=True)
        var = ((v - mu) ** 2).mean(-1, keepdims=True)
        return (v - mu) * jax.lax.rsqrt(var + EPS) * g + bt

    Bx = x.shape[0]
    xn = ln(x, g1[0], bn1[0])
    qkv = jnp.einsum('btd,de->bte', xn, wqkv) + bqkv[0]
    q, k, v = jnp.split(qkv, 3, axis=-1)

    def heads(m):
        return m.reshape(Bx, T, H, DK).transpose(0, 2, 1, 3)   # (B, H, T, DK)

    qh, kh, vh = heads(q), heads(k), heads(v)
    keep = (mask > 0.5)[:, None, :, :]                         # (B, 1, 1, T)
    scores = jnp.einsum('bhqd,bhkd->bhqk', qh, kh) / math.sqrt(DK)
    scores = jnp.where(keep, scores, NEG_INF)
    p = jax.nn.softmax(scores, axis=-1)
    p = jnp.where(keep, p, 0.0)
    ctx = jnp.einsum('bhqk,bhkd->bhqd', p, vh).transpose(0, 2, 1, 3).reshape(Bx, T, D)
    x1 = x + ctx @ wo + bo[0]
    xn2 = ln(x1, g2[0], bn2[0])
    ff = jnp.maximum(xn2 @ w1 + b1[0], 0.0) @ w2 + b2[0]
    return x1 + ff


if __name__ == "__main__":
    key = jax.random.PRNGKey(0)
    kx, kp = jax.random.split(key)

    x = jax.random.normal(kx, (B, T, D), jnp.float32)

    # key-padding mask: batch 0 fully valid, batch 1 has 6 valid frames
    lengths = jnp.array([T, 6], dtype=jnp.int32)
    mask = (jnp.arange(T)[None, :] < lengths[:, None]).astype(jnp.float32)
    mask = mask[:, None, :]  # (B, 1, T)

    params = init_params(kp)

    out, out_mask, cnn_cache = conformer_encoder_layer(x, mask, params)
    jax.block_until_ready(out)
    jax.block_until_ready(out_mask)
    jax.block_until_ready(cnn_cache)

    assert out.shape == (B, T, D)
    assert bool(jnp.all(jnp.isfinite(out)))

    ref = reference_layer(x, mask, params)
    max_err = float(jnp.max(jnp.abs(out - ref)))
    assert bool(jnp.allclose(out, ref, atol=1e-2, rtol=1e-2)), max_err

    print("KERNEL_OK")
</pallas_src>

<mosaic_0001>
module attributes {stable_mosaic.version = 11 : i64} {
  func.func @encoder_layer_kernel(%arg0: i32, %arg1: memref<2x8x32xf32, #tpu.memory_space<vmem>>, %arg2: memref<2x1x8xf32, #tpu.memory_space<vmem>>, %arg3: memref<1x32xf32, #tpu.memory_space<vmem>>, %arg4: memref<1x32xf32, #tpu.memory_space<vmem>>, %arg5: memref<1x32xf32, #tpu.memory_space<vmem>>, %arg6: memref<1x32xf32, #tpu.memory_space<vmem>>, %arg7: memref<32x96xf32, #tpu.memory_space<vmem>>, %arg8: memref<1x96xf32, #tpu.memory_space<vmem>>, %arg9: memref<32x32xf32, #tpu.memory_space<vmem>>, %arg10: memref<1x32xf32, #tpu.memory_space<vmem>>, %arg11: memref<32x64xf32, #tpu.memory_space<vmem>>, %arg12: memref<1x64xf32, #tpu.memory_space<vmem>>, %arg13: memref<64x32xf32, #tpu.memory_space<vmem>>, %arg14: memref<1x32xf32, #tpu.memory_space<vmem>>, %arg15: memref<2x1x256xf32, #tpu.memory_space<vmem>>) attributes {dimension_semantics = [#tpu.dimension_semantics<arbitrary>], iteration_bounds = array<i64: 1>, scalar_prefetch = 0 : i64, scratch_operands = 0 : i64, tpu.core_type = #tpu.core_type<tc>, window_params = [{transform_indices = @transform_0, window_bounds = array<i64: 2, 8, 32>}, {transform_indices = @transform_1, window_bounds = array<i64: 2, 1, 8>}, {pipeline_mode = #tpu.pipeline_mode<synchronous>, transform_indices = @transform_2, window_bounds = array<i64: 1, 32>}, {pipeline_mode = #tpu.pipeline_mode<synchronous>, transform_indices = @transform_3, window_bounds = array<i64: 1, 32>}, {pipeline_mode = #tpu.pipeline_mode<synchronous>, transform_indices = @transform_4, window_bounds = array<i64: 1, 32>}, {pipeline_mode = #tpu.pipeline_mode<synchronous>, transform_indices = @transform_5, window_bounds = array<i64: 1, 32>}, {pipeline_mode = #tpu.pipeline_mode<synchronous>, transform_indices = @transform_6, window_bounds = array<i64: 32, 96>}, {pipeline_mode = #tpu.pipeline_mode<synchronous>, transform_indices = @transform_7, window_bounds = array<i64: 1, 96>}, {pipeline_mode = #tpu.pipeline_mode<synchronous>, transform_indices = @transform_8, window_bounds = array<i64: 32, 32>}, {pipeline_mode = #tpu.pipeline_mode<synchronous>, transform_indices = @transform_9, window_bounds = array<i64: 1, 32>}, {pipeline_mode = #tpu.pipeline_mode<synchronous>, transform_indices = @transform_10, window_bounds = array<i64: 32, 64>}, {pipeline_mode = #tpu.pipeline_mode<synchronous>, transform_indices = @transform_11, window_bounds = array<i64: 1, 64>}, {pipeline_mode = #tpu.pipeline_mode<synchronous>, transform_indices = @transform_12, window_bounds = array<i64: 64, 32>}, {pipeline_mode = #tpu.pipeline_mode<synchronous>, transform_indices = @transform_13, window_bounds = array<i64: 1, 32>}, {transform_indices = @transform_14, window_bounds = array<i64: 2, 1, 256>}]} {
    %c0 = arith.constant 0 : index
    %c0_0 = arith.constant 0 : index
    %c0_1 = arith.constant 0 : index
    %0 = vector.load %arg1[%c0, %c0_0, %c0_1] : memref<2x8x32xf32, #tpu.memory_space<vmem>>, vector<2x8x32xf32>
    %1 = vector.shape_cast %0 : vector<2x8x32xf32> to vector<16x32xf32>
    %c0_2 = arith.constant 0 : index
    %c0_3 = arith.constant 0 : index
    %c0_4 = arith.constant 0 : index
    %2 = vector.load %arg2[%c0_2, %c0_3, %c0_4] : memref<2x1x8xf32, #tpu.memory_space<vmem>>, vector<2x1x8xf32>
    %c0_5 = arith.constant 0 : index
    %c0_6 = arith.constant 0 : index
    %3 = vector.load %arg3[%c0_5, %c0_6] : memref<1x32xf32, #tpu.memory_space<vmem>>, vector<1x32xf32>
    %c0_7 = arith.constant 0 : index
    %c0_8 = arith.constant 0 : index
    %4 = vector.load %arg4[%c0_7, %c0_8] : memref<1x32xf32, #tpu.memory_space<vmem>>, vector<1x32xf32>
    %cst = arith.constant dense<0.000000e+00> : vector<16xf32>
    %5 = vector.multi_reduction <add>, %1, %cst [1] : vector<16x32xf32> to vector<16xf32>
    %6 = vector.shape_cast %5 : vector<16xf32> to vector<16x1xf32>
    %cst_9 = arith.constant 3.200000e+01 : f32
    %7 = vector.broadcast %cst_9 : f32 to vector<16x1xf32>
    %8 = arith.divf %6, %7 : vector<16x1xf32>
    %9 = vector.broadcast %8 : vector<16x1xf32> to vector<16x32xf32>
    %10 = arith.subf %1, %9 : vector<16x32xf32>
    %11 = arith.mulf %10, %10 : vector<16x32xf32>
    %cst_10 = arith.constant dense<0.000000e+00> : vector<16xf32>
    %12 = vector.multi_reduction <add>, %11, %cst_10 [1] : vector<16x32xf32> to vector<16xf32>
    %13 = vector.shape_cast %12 : vector<16xf32> to vector<16x1xf32>
    %cst_11 = arith.constant 3.200000e+01 : f32
    %14 = vector.broadcast %cst_11 : f32 to vector<16x1xf32>
    %15 = arith.divf %13, %14 : vector<16x1xf32>
    %16 = vector.broadcast %8 : vector<16x1xf32> to vector<16x32xf32>
    %17 = arith.subf %1, %16 : vector<16x32xf32>
    %cst_12 = arith.constant 9.99999996E-13 : f32
    %18 = vector.broadcast %cst_12 : f32 to vector<16x1xf32>
    %19 = arith.addf %15, %18 : vector<16x1xf32>
    %20 = math.rsqrt %19 : vector<16x1xf32>
    %21 = vector.broadcast %20 : vector<16x1xf32> to vector<16x32xf32>
    %22 = arith.mulf %17, %21 : vector<16x32xf32>
    %23 = vector.broadcast %3 : vector<1x32xf32> to vector<16x32xf32>
    %24 = arith.mulf %22, %23 : vector<16x32xf32>
    %25 = vector.broadcast %4 : vector<1x32xf32> to vector<16x32xf32>
    %26 = arith.addf %24, %25 : vector<16x32xf32>
    %c0_13 = arith.constant 0 : index
    %c0_14 = arith.constant 0 : index
    %27 = vector.load %arg7[%c0_13, %c0_14] : memref<32x96xf32, #tpu.memory_space<vmem>>, vector<32x96xf32>
    %cst_15 = arith.constant dense<0.000000e+00> : vector<16x96xf32>
    %28 = tpu.matmul %26, %27, %cst_15 {dimension_numbers = #tpu.dot_dimension_numbers<[1], [0], [0], [1], [0, 0, 1, 1], [], []>} : vector<16x32xf32>, vector<32x96xf32>, vector<16x96xf32> -> vector<16x96xf32>
    %c0_16 = arith.constant 0 : index
    %c0_17 = arith.constant 0 : index
    %29 = vector.load %arg8[%c0_16, %c0_17] : memref<1x96xf32, #tpu.memory_space<vmem>>, vector<1x96xf32>
    %30 = vector.broadcast %29 : vector<1x96xf32> to vector<16x96xf32>
    %31 = arith.addf %28, %30 : vector<16x96xf32>
    %32 = vector.extract_strided_slice %31 {offsets = [0, 0], sizes = [16, 32], strides = [1, 1]} : vector<16x96xf32> to vector<16x32xf32>
    %33 = vector.extract_strided_slice %31 {offsets = [0, 32], sizes = [16, 32], strides = [1, 1]} : vector<16x96xf32> to vector<16x32xf32>
    %34 = vector.extract_strided_slice %31 {offsets = [0, 64], sizes = [16, 32], strides = [1, 1]} : vector<16x96xf32> to vector<16x32xf32>
    %35 = vector.extract_strided_slice %32 {offsets = [0, 0], sizes = [8, 8], strides = [1, 1]} : vector<16x32xf32> to vector<8x8xf32>
    %36 = vector.extract_strided_slice %32 {offsets = [0, 8], sizes = [8, 8], strides = [1, 1]} : vector<16x32xf32> to vector<8x8xf32>
    %37 = vector.extract_strided_slice %32 {offsets = [0, 16], sizes = [8, 8], strides = [1, 1]} : vector<16x32xf32> to vector<8x8xf32>
    %38 = vector.extract_strided_slice %32 {offsets = [0, 24], sizes = [8, 8], strides = [1, 1]} : vector<16x32xf32> to vector<8x8xf32>
    %39 = vector.extract_strided_slice %32 {offsets = [8, 0], sizes = [8, 8], strides = [1, 1]} : vector<16x32xf32> to vector<8x8xf32>
    %40 = vector.extract_strided_slice %32 {offsets = [8, 8], sizes = [8, 8], strides = [1, 1]} : vector<16x32xf32> to vector<8x8xf32>
    %41 = vector.extract_strided_slice %32 {offsets = [8, 16], sizes = [8, 8], strides = [1, 1]} : vector<16x32xf32> to vector<8x8xf32>
    %42 = vector.extract_strided_slice %32 {offsets = [8, 24], sizes = [8, 8], strides = [1, 1]} : vector<16x32xf32> to vector<8x8xf32>
    %43 = vector.shape_cast %35 : vector<8x8xf32> to vector<1x8x8xf32>
    %44 = vector.shape_cast %36 : vector<8x8xf32> to vector<1x8x8xf32>
    %45 = vector.shape_cast %37 : vector<8x8xf32> to vector<1x8x8xf32>
    %46 = vector.shape_cast %38 : vector<8x8xf32> to vector<1x8x8xf32>
    %47 = vector.shape_cast %39 : vector<8x8xf32> to vector<1x8x8xf32>
    %48 = vector.shape_cast %40 : vector<8x8xf32> to vector<1x8x8xf32>
    %49 = vector.shape_cast %41 : vector<8x8xf32> to vector<1x8x8xf32>
    %50 = vector.shape_cast %42 : vector<8x8xf32> to vector<1x8x8xf32>
    %51 = tpu.concatenate %43, %44, %45, %46, %47, %48, %49, %50 in 0 : vector<1x8x8xf32>, vector<1x8x8xf32>, vector<1x8x8xf32>, vector<1x8x8xf32>, vector<1x8x8xf32>, vector<1x8x8xf32>, vector<1x8x8xf32>, vector<1x8x8xf32> -> vector<8x8x8xf32>
    %52 = vector.extract_strided_slice %33 {offsets = [0, 0], sizes = [8, 8], strides = [1, 1]} : vector<16x32xf32> to vector<8x8xf32>
    %53 = vector.extract_strided_slice %33 {offsets = [0, 8], sizes = [8, 8], strides = [1, 1]} : vector<16x32xf32> to vector<8x8xf32>
    %54 = vector.extract_strided_slice %33 {offsets = [0, 16], sizes = [8, 8], strides = [1, 1]} : vector<16x32xf32> to vector<8x8xf32>
    %55 = vector.extract_strided_slice %33 {offsets = [0, 24], sizes = [8, 8], strides = [1, 1]} : vector<16x32xf32> to vector<8x8xf32>
    %56 = vector.extract_strided_slice %33 {offsets = [8, 0], sizes = [8, 8], strides = [1, 1]} : vector<16x32xf32> to vector<8x8xf32>
    %57 = vector.extract_strided_slice %33 {offsets = [8, 8], sizes = [8, 8], strides = [1, 1]} : vector<16x32xf32> to vector<8x8xf32>
    %58 = vector.extract_strided_slice %33 {offsets = [8, 16], sizes = [8, 8], strides = [1, 1]} : vector<16x32xf32> to vector<8x8xf32>
    %59 = vector.extract_strided_slice %33 {offsets = [8, 24], sizes = [8, 8], strides = [1, 1]} : vector<16x32xf32> to vector<8x8xf32>
    %60 = vector.shape_cast %52 : vector<8x8xf32> to vector<1x8x8xf32>
    %61 = vector.shape_cast %53 : vector<8x8xf32> to vector<1x8x8xf32>
    %62 = vector.shape_cast %54 : vector<8x8xf32> to vector<1x8x8xf32>
    %63 = vector.shape_cast %55 : vector<8x8xf32> to vector<1x8x8xf32>
    %64 = vector.shape_cast %56 : vector<8x8xf32> to vector<1x8x8xf32>
    %65 = vector.shape_cast %57 : vector<8x8xf32> to vector<1x8x8xf32>
    %66 = vector.shape_cast %58 : vector<8x8xf32> to vector<1x8x8xf32>
    %67 = vector.shape_cast %59 : vector<8x8xf32> to vector<1x8x8xf32>
    %68 = tpu.concatenate %60, %61, %62, %63, %64, %65, %66, %67 in 0 : vector<1x8x8xf32>, vector<1x8x8xf32>, vector<1x8x8xf32>, vector<1x8x8xf32>, vector<1x8x8xf32>, vector<1x8x8xf32>, vector<1x8x8xf32>, vector<1x8x8xf32> -> vector<8x8x8xf32>
    %69 = vector.extract_strided_slice %34 {offsets = [0, 0], sizes = [8, 8], strides = [1, 1]} : vector<16x32xf32> to vector<8x8xf32>
    %70 = vector.extract_strided_slice %34 {offsets = [0, 8], sizes = [8, 8], strides = [1, 1]} : vector<16x32xf32> to vector<8x8xf32>
    %71 = vector.extract_strided_slice %34 {offsets = [0, 16], sizes = [8, 8], strides = [1, 1]} : vector<16x32xf32> to vector<8x8xf32>
    %72 = vector.extract_strided_slice %34 {offsets = [0, 24], sizes = [8, 8], strides = [1, 1]} : vector<16x32xf32> to vector<8x8xf32>
    %73 = vector.extract_strided_slice %34 {offsets = [8, 0], sizes = [8, 8], strides = [1, 1]} : vector<16x32xf32> to vector<8x8xf32>
    %74 = vector.extract_strided_slice %34 {offsets = [8, 8], sizes = [8, 8], strides = [1, 1]} : vector<16x32xf32> to vector<8x8xf32>
    %75 = vector.extract_strided_slice %34 {offsets = [8, 16], sizes = [8, 8], strides = [1, 1]} : vector<16x32xf32> to vector<8x8xf32>
    %76 = vector.extract_strided_slice %34 {offsets = [8, 24], sizes = [8, 8], strides = [1, 1]} : vector<16x32xf32> to vector<8x8xf32>
    %77 = vector.shape_cast %69 : vector<8x8xf32> to vector<1x8x8xf32>
    %78 = vector.shape_cast %70 : vector<8x8xf32> to vector<1x8x8xf32>
    %79 = vector.shape_cast %71 : vector<8x8xf32> to vector<1x8x8xf32>
    %80 = vector.shape_cast %72 : vector<8x8xf32> to vector<1x8x8xf32>
    %81 = vector.shape_cast %73 : vector<8x8xf32> to vector<1x8x8xf32>
    %82 = vector.shape_cast %74 : vector<8x8xf32> to vector<1x8x8xf32>
    %83 = vector.shape_cast %75 : vector<8x8xf32> to vector<1x8x8xf32>
    %84 = vector.shape_cast %76 : vector<8x8xf32> to vector<1x8x8xf32>
    %85 = tpu.concatenate %77, %78, %79, %80, %81, %82, %83, %84 in 0 : vector<1x8x8xf32>, vector<1x8x8xf32>, vector<1x8x8xf32>, vector<1x8x8xf32>, vector<1x8x8xf32>, vector<1x8x8xf32>, vector<1x8x8xf32>, vector<1x8x8xf32> -> vector<8x8x8xf32>
    %86 = vector.extract_strided_slice %2 {offsets = [0, 0, 0], sizes = [1, 1, 8], strides = [1, 1, 1]} : vector<2x1x8xf32> to vector<1x1x8xf32>
    %87 = vector.shape_cast %86 : vector<1x1x8xf32> to vector<1x8xf32>
    %88 = vector.extract_strided_slice %2 {offsets = [0, 0, 0], sizes = [1, 1, 8], strides = [1, 1, 1]} : vector<2x1x8xf32> to vector<1x1x8xf32>
    %89 = vector.shape_cast %88 : vector<1x1x8xf32> to vector<1x8xf32>
    %90 = vector.extract_strided_slice %2 {offsets = [0, 0, 0], sizes = [1, 1, 8], strides = [1, 1, 1]} : vector<2x1x8xf32> to vector<1x1x8xf32>
    %91 = vector.shape_cast %90 : vector<1x1x8xf32> to vector<1x8xf32>
    %92 = vector.extract_strided_slice %2 {offsets = [0, 0, 0], sizes = [1, 1, 8], strides = [1, 1, 1]} : vector<2x1x8xf32> to vector<1x1x8xf32>
    %93 = vector.shape_cast %92 : vector<1x1x8xf32> to vector<1x8xf32>
    %94 = vector.extract_strided_slice %2 {offsets = [1, 0, 0], sizes = [1, 1, 8], strides = [1, 1, 1]} : vector<2x1x8xf32> to vector<1x1x8xf32>
    %95 = vector.shape_cast %94 : vector<1x1x8xf32> to vector<1x8xf32>
    %96 = vector.extract_strided_slice %2 {offsets = [1, 0, 0], sizes = [1, 1, 8], strides = [1, 1, 1]} : vector<2x1x8xf32> to vector<1x1x8xf32>
    %97 = vector.shape_cast %96 : vector<1x1x8xf32> to vector<1x8xf32>
    %98 = vector.extract_strided_slice %2 {offsets = [1, 0, 0], sizes = [1, 1, 8], strides = [1, 1, 1]} : vector<2x1x8xf32> to vector<1x1x8xf32>
    %99 = vector.shape_cast %98 : vector<1x1x8xf32> to vector<1x8xf32>
    %100 = vector.extract_strided_slice %2 {offsets = [1, 0, 0], sizes = [1, 1, 8], strides = [1, 1, 1]} : vector<2x1x8xf32> to vector<1x1x8xf32>
    %101 = vector.shape_cast %100 : vector<1x1x8xf32> to vector<1x8xf32>
    %102 = vector.shape_cast %87 : vector<1x8xf32> to vector<1x1x8xf32>
    %103 = vector.shape_cast %89 : vector<1x8xf32> to vector<1x1x8xf32>
    %104 = vector.shape_cast %91 : vector<1x8xf32> to vector<1x1x8xf32>
    %105 = vector.shape_cast %93 : vector<1x8xf32> to vector<1x1x8xf32>
    %106 = vector.shape_cast %95 : vector<1x8xf32> to vector<1x1x8xf32>
    %107 = vector.shape_cast %97 : vector<1x8xf32> to vector<1x1x8xf32>
    %108 = vector.shape_cast %99 : vector<1x8xf32> to vector<1x1x8xf32>
    %109 = vector.shape_cast %101 : vector<1x8xf32> to vector<1x1x8xf32>
    %110 = tpu.concatenate %102, %103, %104, %105, %106, %107, %108, %109 in 0 : vector<1x1x8xf32>, vector<1x1x8xf32>, vector<1x1x8xf32>, vector<1x1x8xf32>, vector<1x1x8xf32>, vector<1x1x8xf32>, vector<1x1x8xf32>, vector<1x1x8xf32> -> vector<8x1x8xf32>
    %cst_18 = arith.constant 5.000000e-01 : f32
    %111 = vector.broadcast %cst_18 : f32 to vector<8x1x8xf32>
    %112 = arith.cmpf ogt, %110, %111 : vector<8x1x8xf32>
    "tpu.trace_start"() <{level = 10 : i32, message = "nqd,nkd->nqk"}> : () -> ()
    %cst_19 = arith.constant dense<0.000000e+00> : vector<8x8x8xf32>
    %113 = tpu.matmul %51, %68, %cst_19 {dimension_numbers = #tpu.dot_dimension_numbers<[2], [2], [1], [1], [0, 0, 0, 1, 1, 1], [0], [0]>} : vector<8x8x8xf32>, vector<8x8x8xf32>, vector<8x8x8xf32> -> vector<8x8x8xf32>
    "tpu.trace_stop"() : () -> ()
    %cst_20 = arith.constant 0.353553385 : f32
    %114 = vector.broadcast %cst_20 : f32 to vector<8x8x8xf32>
    %115 = arith.mulf %113, %114 : vector<8x8x8xf32>
    %cst_21 = arith.constant -1.000000e+30 : f32
    %116 = vector.shape_cast %112 : vector<8x1x8xi1> to vector<8x1x8xi1>
    %117 = vector.broadcast %116 : vector<8x1x8xi1> to vector<8x8x8xi1>
    %118 = vector.broadcast %cst_21 : f32 to vector<8x8x8xf32>
    %119 = arith.select %117, %115, %118 : vector<8x8x8xi1>, vector<8x8x8xf32>
    %cst_22 = arith.constant dense<0xFF800000> : vector<8x8xf32>
    %120 = vector.multi_reduction <maximumf>, %119, %cst_22 [2] : vector<8x8x8xf32> to vector<8x8xf32>
    %121 = vector.shape_cast %120 : vector<8x8xf32> to vector<8x8x1xf32>
    %122 = vector.broadcast %121 : vector<8x8x1xf32> to vector<8x8x8xf32>
    %123 = arith.subf %119, %122 : vector<8x8x8xf32>
    %124 = math.exp %123 : vector<8x8x8xf32>
    %cst_23 = arith.constant dense<0.000000e+00> : vector<8x8xf32>
    %125 = vector.multi_reduction <add>, %124, %cst_23 [2] : vector<8x8x8xf32> to vector<8x8xf32>
    %126 = vector.shape_cast %125 : vector<8x8xf32> to vector<8x8x1xf32>
    %127 = tpu.reciprocal %126 {approx = true} : vector<8x8x1xf32> -> vector<8x8x1xf32>
    %128 = vector.broadcast %127 : vector<8x8x1xf32> to vector<8x8x8xf32>
    %129 = arith.mulf %124, %128 : vector<8x8x8xf32>
    %cst_24 = arith.constant 0.000000e+00 : f32
    %130 = vector.shape_cast %112 : vector<8x1x8xi1> to vector<8x1x8xi1>
    %131 = vector.broadcast %130 : vector<8x1x8xi1> to vector<8x8x8xi1>
    %132 = vector.broadcast %cst_24 : f32 to vector<8x8x8xf32>
    %133 = arith.select %131, %129, %132 : vector<8x8x8xi1>, vector<8x8x8xf32>
    "tpu.trace_start"() <{level = 10 : i32, message = "nqk,nkd->nqd"}> : () -> ()
    %cst_25 = arith.constant dense<0.000000e+00> : vector<8x8x8xf32>
    %134 = tpu.matmul %133, %85, %cst_25 {dimension_numbers = #tpu.dot_dimension_numbers<[2], [1], [1], [2], [0, 0, 0, 1, 1, 2], [0], [0]>} : vector<8x8x8xf32>, vector<8x8x8xf32>, vector<8x8x8xf32> -> vector<8x8x8xf32>
    "tpu.trace_stop"() : () -> ()
    %135 = vector.extract_strided_slice %134 {offsets = [0, 0, 0], sizes = [1, 8, 8], strides = [1, 1, 1]} : vector<8x8x8xf32> to vector<1x8x8xf32>
    %136 = vector.shape_cast %135 : vector<1x8x8xf32> to vector<8x8xf32>
    %137 = vector.extract_strided_slice %134 {offsets = [1, 0, 0], sizes = [1, 8, 8], strides = [1, 1, 1]} : vector<8x8x8xf32> to vector<1x8x8xf32>
    %138 = vector.shape_cast %137 : vector<1x8x8xf32> to vector<8x8xf32>
    %139 = vector.extract_strided_slice %134 {offsets = [2, 0, 0], sizes = [1, 8, 8], strides = [1, 1, 1]} : vector<8x8x8xf32> to vector<1x8x8xf32>
    %140 = vector.shape_cast %139 : vector<1x8x8xf32> to vector<8x8xf32>
    %141 = vector.extract_strided_slice %134 {offsets = [3, 0, 0], sizes = [1, 8, 8], strides = [1, 1, 1]} : vector<8x8x8xf32> to vector<1x8x8xf32>
    %142 = vector.shape_cast %141 : vector<1x8x8xf32> to vector<8x8xf32>
    %143 = tpu.concatenate %136, %138, %140, %142 in 1 : vector<8x8xf32>, vector<8x8xf32>, vector<8x8xf32>, vector<8x8xf32> -> vector<8x32xf32>
    %144 = vector.extract_strided_slice %134 {offsets = [4, 0, 0], sizes = [1, 8, 8], strides = [1, 1, 1]} : vector<8x8x8xf32> to vector<1x8x8xf32>
    %145 = vector.shape_cast %144 : vector<1x8x8xf32> to vector<8x8xf32>
    %146 = vector.extract_strided_slice %134 {offsets = [5, 0, 0], sizes = [1, 8, 8], strides = [1, 1, 1]} : vector<8x8x8xf32> to vector<1x8x8xf32>
    %147 = vector.shape_cast %146 : vector<1x8x8xf32> to vector<8x8xf32>
    %148 = vector.extract_strided_slice %134 {offsets = [6, 0, 0], sizes = [1, 8, 8], strides = [1, 1, 1]} : vector<8x8x8xf32> to vector<1x8x8xf32>
    %149 = vector.shape_cast %148 : vector<1x8x8xf32> to vector<8x8xf32>
    %150 = vector.extract_strided_slice %134 {offsets = [7, 0, 0], sizes = [1, 8, 8], strides = [1, 1, 1]} : vector<8x8x8xf32> to vector<1x8x8xf32>
    %151 = vector.shape_cast %150 : vector<1x8x8xf32> to vector<8x8xf32>
    %152 = tpu.concatenate %145, %147, %149, %151 in 1 : vector<8x8xf32>, vector<8x8xf32>, vector<8x8xf32>, vector<8x8xf32> -> vector<8x32xf32>
    %153 = tpu.concatenate %143, %152 in 0 : vector<8x32xf32>, vector<8x32xf32> -> vector<16x32xf32>
    %c0_26 = arith.constant 0 : index
    %c0_27 = arith.constant 0 : index
    %154 = vector.load %arg9[%c0_26, %c0_27] : memref<32x32xf32, #tpu.memory_space<vmem>>, vector<32x32xf32>
    %cst_28 = arith.constant dense<0.000000e+00> : vector<16x32xf32>
    %155 = tpu.matmul %153, %154, %cst_28 {dimension_numbers = #tpu.dot_dimension_numbers<[1], [0], [0], [1], [0, 0, 1, 1], [], []>} : vector<16x32xf32>, vector<32x32xf32>, vector<16x32xf32> -> vector<16x32xf32>
    %c0_29 = arith.constant 0 : index
    %c0_30 = arith.constant 0 : index
    %156 = vector.load %arg10[%c0_29, %c0_30] : memref<1x32xf32, #tpu.memory_space<vmem>>, vector<1x32xf32>
    %157 = vector.broadcast %156 : vector<1x32xf32> to vector<16x32xf32>
    %158 = arith.addf %155, %157 : vector<16x32xf32>
    %159 = arith.addf %1, %158 : vector<16x32xf32>
    %c0_31 = arith.constant 0 : index
    %c0_32 = arith.constant 0 : index
    %160 = vector.load %arg5[%c0_31, %c0_32] : memref<1x32xf32, #tpu.memory_space<vmem>>, vector<1x32xf32>
    %c0_33 = arith.constant 0 : index
    %c0_34 = arith.constant 0 : index
    %161 = vector.load %arg6[%c0_33, %c0_34] : memref<1x32xf32, #tpu.memory_space<vmem>>, vector<1x32xf32>
    %cst_35 = arith.constant dense<0.000000e+00> : vector<16xf32>
    %162 = vector.multi_reduction <add>, %159, %cst_35 [1] : vector<16x32xf32> to vector<16xf32>
    %163 = vector.shape_cast %162 : vector<16xf32> to vector<16x1xf32>
    %cst_36 = arith.constant 3.200000e+01 : f32
    %164 = vector.broadcast %cst_36 : f32 to vector<16x1xf32>
    %165 = arith.divf %163, %164 : vector<16x1xf32>
    %166 = vector.broadcast %165 : vector<16x1xf32> to vector<16x32xf32>
    %167 = arith.subf %159, %166 : vector<16x32xf32>
    %168 = arith.mulf %167, %167 : vector<16x32xf32>
    %cst_37 = arith.constant dense<0.000000e+00> : vector<16xf32>
    %169 = vector.multi_reduction <add>, %168, %cst_37 [1] : vector<16x32xf32> to vector<16xf32>
    %170 = vector.shape_cast %169 : vector<16xf32> to vector<16x1xf32>
    %cst_38 = arith.constant 3.200000e+01 : f32
    %171 = vector.broadcast %cst_38 : f32 to vector<16x1xf32>
    %172 = arith.divf %170, %171 : vector<16x1xf32>
    %173 = vector.broadcast %165 : vector<16x1xf32> to vector<16x32xf32>
    %174 = arith.subf %159, %173 : vector<16x32xf32>
    %cst_39 = arith.constant 9.99999996E-13 : f32
    %175 = vector.broadcast %cst_39 : f32 to vector<16x1xf32>
    %176 = arith.addf %172, %175 : vector<16x1xf32>
    %177 = math.rsqrt %176 : vector<16x1xf32>
    %178 = vector.broadcast %177 : vector<16x1xf32> to vector<16x32xf32>
    %179 = arith.mulf %174, %178 : vector<16x32xf32>
    %180 = vector.broadcast %160 : vector<1x32xf32> to vector<16x32xf32>
    %181 = arith.mulf %179, %180 : vector<16x32xf32>
    %182 = vector.broadcast %161 : vector<1x32xf32> to vector<16x32xf32>
    %183 = arith.addf %181, %182 : vector<16x32xf32>
    %c0_40 = arith.constant 0 : index
    %c0_41 = arith.constant 0 : index
    %184 = vector.load %arg11[%c0_40, %c0_41] : memref<32x64xf32, #tpu.memory_space<vmem>>, vector<32x64xf32>
    %cst_42 = arith.constant dense<0.000000e+00> : vector<16x64xf32>
    %185 = tpu.matmul %183, %184, %cst_42 {dimension_numbers = #tpu.dot_dimension_numbers<[1], [0], [0], [1], [0, 0, 1, 1], [], []>} : vector<16x32xf32>, vector<32x64xf32>, vector<16x64xf32> -> vector<16x64xf32>
    %c0_43 = arith.constant 0 : index
    %c0_44 = arith.constant 0 : index
    %186 = vector.load %arg12[%c0_43, %c0_44] : memref<1x64xf32, #tpu.memory_space<vmem>>, vector<1x64xf32>
    %187 = vector.broadcast %186 : vector<1x64xf32> to vector<16x64xf32>
    %188 = arith.addf %185, %187 : vector<16x64xf32>
    %cst_45 = arith.constant 0.000000e+00 : f32
    %189 = vector.broadcast %cst_45 : f32 to vector<16x64xf32>
    %190 = arith.maximumf %188, %189 : vector<16x64xf32>
    %c0_46 = arith.constant 0 : index
    %c0_47 = arith.constant 0 : index
    %191 = vector.load %arg13[%c0_46, %c0_47] : memref<64x32xf32, #tpu.memory_space<vmem>>, vector<64x32xf32>
    %cst_48 = arith.constant dense<0.000000e+00> : vector<16x32xf32>
    %192 = tpu.matmul %190, %191, %cst_48 {dimension_numbers = #tpu.dot_dimension_numbers<[1], [0], [0], [1], [0, 0, 1, 1], [], []>} : vector<16x64xf32>, vector<64x32xf32>, vector<16x32xf32> -> vector<16x32xf32>
    %c0_49 = arith.constant 0 : index
    %c0_50 = arith.constant 0 : index
    %193 = vector.load %arg14[%c0_49, %c0_50] : memref<1x32xf32, #tpu.memory_space<vmem>>, vector<1x32xf32>
    %194 = vector.broadcast %193 : vector<1x32xf32> to vector<16x32xf32>
    %195 = arith.addf %192, %194 : vector<16x32xf32>
    %196 = arith.addf %159, %195 : vector<16x32xf32>
    %197 = vector.extract_strided_slice %196 {offsets = [0, 0], sizes = [1, 32], strides = [1, 1]} : vector<16x32xf32> to vector<1x32xf32>
    %198 = vector.extract_strided_slice %196 {offsets = [1, 0], sizes = [1, 32], strides = [1, 1]} : vector<16x32xf32> to vector<1x32xf32>
    %199 = vector.extract_strided_slice %196 {offsets = [2, 0], sizes = [1, 32], strides = [1, 1]} : vector<16x32xf32> to vector<1x32xf32>
    %200 = vector.extract_strided_slice %196 {offsets = [3, 0], sizes = [1, 32], strides = [1, 1]} : vector<16x32xf32> to vector<1x32xf32>
    %201 = vector.extract_strided_slice %196 {offsets = [4, 0], sizes = [1, 32], strides = [1, 1]} : vector<16x32xf32> to vector<1x32xf32>
    %202 = vector.extract_strided_slice %196 {offsets = [5, 0], sizes = [1, 32], strides = [1, 1]} : vector<16x32xf32> to vector<1x32xf32>
    %203 = vector.extract_strided_slice %196 {offsets = [6, 0], sizes = [1, 32], strides = [1, 1]} : vector<16x32xf32> to vector<1x32xf32>
    %204 = vector.extract_strided_slice %196 {offsets = [7, 0], sizes = [1, 32], strides = [1, 1]} : vector<16x32xf32> to vector<1x32xf32>
    %205 = tpu.concatenate %197, %198, %199, %200, %201, %202, %203, %204 in 1 : vector<1x32xf32>, vector<1x32xf32>, vector<1x32xf32>, vector<1x32xf32>, vector<1x32xf32>, vector<1x32xf32>, vector<1x32xf32>, vector<1x32xf32> -> vector<1x256xf32>
    %206 = vector.extract_strided_slice %196 {offsets = [8, 0], sizes = [1, 32], strides = [1, 1]} : vector<16x32xf32> to vector<1x32xf32>
    %207 = vector.extract_strided_slice %196 {offsets = [9, 0], sizes = [1, 32], strides = [1, 1]} : vector<16x32xf32> to vector<1x32xf32>
    %208 = vector.extract_strided_slice %196 {offsets = [10, 0], sizes = [1, 32], strides = [1, 1]} : vector<16x32xf32> to vector<1x32xf32>
    %209 = vector.extract_strided_slice %196 {offsets = [11, 0], sizes = [1, 32], strides = [1, 1]} : vector<16x32xf32> to vector<1x32xf32>
    %210 = vector.extract_strided_slice %196 {offsets = [12, 0], sizes = [1, 32], strides = [1, 1]} : vector<16x32xf32> to vector<1x32xf32>
    %211 = vector.extract_strided_slice %196 {offsets = [13, 0], sizes = [1, 32], strides = [1, 1]} : vector<16x32xf32> to vector<1x32xf32>
    %212 = vector.extract_strided_slice %196 {offsets = [14, 0], sizes = [1, 32], strides = [1, 1]} : vector<16x32xf32> to vector<1x32xf32>
    %213 = vector.extract_strided_slice %196 {offsets = [15, 0], sizes = [1, 32], strides = [1, 1]} : vector<16x32xf32> to vector<1x32xf32>
    %214 = tpu.concatenate %206, %207, %208, %209, %210, %211, %212, %213 in 1 : vector<1x32xf32>, vector<1x32xf32>, vector<1x32xf32>, vector<1x32xf32>, vector<1x32xf32>, vector<1x32xf32>, vector<1x32xf32>, vector<1x32xf32> -> vector<1x256xf32>
    %215 = vector.shape_cast %205 : vector<1x256xf32> to vector<1x1x256xf32>
    %216 = vector.shape_cast %214 : vector<1x256xf32> to vector<1x1x256xf32>
    %217 = tpu.concatenate %215, %216 in 0 : vector<1x1x256xf32>, vector<1x1x256xf32> -> vector<2x1x256xf32>
    %c0_51 = arith.constant 0 : index
    %c0_52 = arith.constant 0 : index
    %c0_53 = arith.constant 0 : index
    %218 = vector.load %arg15[%c0_51, %c0_52, %c0_53] : memref<2x1x256xf32, #tpu.memory_space<vmem>>, vector<2x1x256xf32>
    tpu.vector_store %arg15[%c0_51, %c0_52, %c0_53], %217 {strides = array<i32>} : memref<2x1x256xf32, #tpu.memory_space<vmem>>, vector<2x1x256xf32>,
    return
  }
  func.func @transform_0(%arg0: i32) -> (i32, i32, i32) {
    %c0_i32 = arith.constant 0 : i32
    %c0_i32_0 = arith.constant 0 : i32
    %c0_i32_1 = arith.constant 0 : i32
    return %arg0, %c0_i32, %c0_i32_0 : i32, i32, i32
  }
  func.func @transform_1(%arg0: i32) -> (i32, i32, i32) {
    %c0_i32 = arith.constant 0 : i32
    %c0_i32_0 = arith.constant 0 : i32
    %c0_i32_1 = arith.constant 0 : i32
    return %arg0, %c0_i32, %c0_i32_0 : i32, i32, i32
  }
  func.func @transform_2(%arg0: i32) -> (i32, i32) {
    %c0_i32 = arith.constant 0 : i32
    %c0_i32_0 = arith.constant 0 : i32
    %c0_i32_1 = arith.constant 0 : i32
    return %c0_i32, %c0_i32_0 : i32, i32
  }
  func.func @transform_3(%arg0: i32) -> (i32, i32) {
    %c0_i32 = arith.constant 0 : i32
    %c0_i32_0 = arith.constant 0 : i32
    %c0_i32_1 = arith.constant 0 : i32
    return %c0_i32, %c0_i32_0 : i32, i32
  }
  func.func @transform_4(%arg0: i32) -> (i32, i32) {
    %c0_i32 = arith.constant 0 : i32
    %c0_i32_0 = arith.constant 0 : i32
    %c0_i32_1 = arith.constant 0 : i32
    return %c0_i32, %c0_i32_0 : i32, i32
  }
  func.func @transform_5(%arg0: i32) -> (i32, i32) {
    %c0_i32 = arith.constant 0 : i32
    %c0_i32_0 = arith.constant 0 : i32
    %c0_i32_1 = arith.constant 0 : i32
    return %c0_i32, %c0_i32_0 : i32, i32
  }
  func.func @transform_6(%arg0: i32) -> (i32, i32) {
    %c0_i32 = arith.constant 0 : i32
    %c0_i32_0 = arith.constant 0 : i32
    %c0_i32_1 = arith.constant 0 : i32
    return %c0_i32, %c0_i32_0 : i32, i32
  }
  func.func @transform_7(%arg0: i32) -> (i32, i32) {
    %c0_i32 = arith.constant 0 : i32
    %c0_i32_0 = arith.constant 0 : i32
    %c0_i32_1 = arith.constant 0 : i32
    return %c0_i32, %c0_i32_0 : i32, i32
  }
  func.func @transform_8(%arg0: i32) -> (i32, i32) {
    %c0_i32 = arith.constant 0 : i32
    %c0_i32_0 = arith.constant 0 : i32
    %c0_i32_1 = arith.constant 0 : i32
    return %c0_i32, %c0_i32_0 : i32, i32
  }
  func.func @transform_9(%arg0: i32) -> (i32, i32) {
    %c0_i32 = arith.constant 0 : i32
    %c0_i32_0 = arith.constant 0 : i32
    %c0_i32_1 = arith.constant 0 : i32
    return %c0_i32, %c0_i32_0 : i32, i32
  }
  func.func @transform_10(%arg0: i32) -> (i32, i32) {
    %c0_i32 = arith.constant 0 : i32
    %c0_i32_0 = arith.constant 0 : i32
    %c0_i32_1 = arith.constant 0 : i32
    return %c0_i32, %c0_i32_0 : i32, i32
  }
  func.func @transform_11(%arg0: i32) -> (i32, i32) {
    %c0_i32 = arith.constant 0 : i32
    %c0_i32_0 = arith.constant 0 : i32
    %c0_i32_1 = arith.constant 0 : i32
    return %c0_i32, %c0_i32_0 : i32, i32
  }
  func.func @transform_12(%arg0: i32) -> (i32, i32) {
    %c0_i32 = arith.constant 0 : i32
    %c0_i32_0 = arith.constant 0 : i32
    %c0_i32_1 = arith.constant 0 : i32
    return %c0_i32, %c0_i32_0 : i32, i32
  }
  func.func @transform_13(%arg0: i32) -> (i32, i32) {
    %c0_i32 = arith.constant 0 : i32
    %c0_i32_0 = arith.constant 0 : i32
    %c0_i32_1 = arith.constant 0 : i32
    return %c0_i32, %c0_i32_0 : i32, i32
  }
  func.func @transform_14(%arg0: i32) -> (i32, i32, i32) {
    %c0_i32 = arith.constant 0 : i32
    %c0_i32_0 = arith.constant 0 : i32
    %c0_i32_1 = arith.constant 0 : i32
    return %arg0, %c0_i32, %c0_i32_0 : i32, i32, i32
  }
}

</mosaic_0001>

<llo_original>
// kernel: tpu_custom_call.1
$region0: #{tpu_custom_call.1}
  #allocation0 [shape = 'u32[]', space=smem, size = 0x4, offset = 0x4, fixed_abs, tag = 'smem constant byte address 0x4 - core index']
  #allocation1 [shape = 'u32[144,128]{1,0:T(1,128)}', space=vmem, size = 0x12000, scoped, tag = 'internal scratch']
  %s0 = inlined_call_operand.hbm [shape: f32[2,8,32], index: 0, kind: input, shape index: {}]
  %s1 = inlined_call_operand.vmem [shape: f32[2,1,8], index: 1, kind: input, shape index: {}]
  %s2 = inlined_call_operand.vmem [shape: f32[1,32], index: 2, kind: input, shape index: {}]
  %s3 = inlined_call_operand.vmem [shape: f32[1,32], index: 3, kind: input, shape index: {}]
  %s4 = inlined_call_operand.vmem [shape: f32[1,32], index: 4, kind: input, shape index: {}]
  %s5 = inlined_call_operand.vmem [shape: f32[1,32], index: 5, kind: input, shape index: {}]
  %s6 = inlined_call_operand.vmem [shape: f32[32,96], index: 6, kind: input, shape index: {}]
  %s7 = inlined_call_operand.vmem [shape: f32[1,96], index: 7, kind: input, shape index: {}]
  %s8 = inlined_call_operand.vmem [shape: f32[32,32], index: 8, kind: input, shape index: {}]
  %s9 = inlined_call_operand.vmem [shape: f32[1,32], index: 9, kind: input, shape index: {}]
  %s10 = inlined_call_operand.vmem [shape: f32[32,64], index: 10, kind: input, shape index: {}]
  %s11 = inlined_call_operand.vmem [shape: f32[1,64], index: 11, kind: input, shape index: {}]
  %s12 = inlined_call_operand.vmem [shape: f32[64,32], index: 12, kind: input, shape index: {}]
  %s13 = inlined_call_operand.vmem [shape: f32[1,32], index: 13, kind: input, shape index: {}]
  %s14 = inlined_call_operand.hbm [shape: f32[2,1,256], index: 14, kind: output, shape index: {}]
  %s15 = sld [smem:[#allocation0]]
  $region70: #{tpu_custom_call.1} parent=0
    _
  %s17 = ssub.s32 1, %s15
  %s18 = scalar_select 0, %s17, %s15
  $region1: #{tpu_custom_call.1} parent=0
    #allocation2 [shape = 'u8[8192]{0}', space=vmem, size = 0x2000, scoped, tag = 'input window, operand 0, single buffered']
    #allocation3 [shape = 's32[1]{0}', space=sflag, size = 0x4, scoped, tag = 'scoped memory for tpu_custom_call.1']
    #allocation4 [shape = 's32[1]{0}', space=sflag, size = 0x4, scoped, tag = 'scoped memory for tpu_custom_call.1']
    #allocation5 [shape = 'u8[2048]{0}', space=vmem, size = 0x800, scoped, tag = 'output window, operand 0, single buffered']
    %19 = vsyncpa [#allocation3], 0
    %20 = vsyncpa [#allocation4], 0
    // Predicated region
    $region2: #{tpu_custom_call.1} parent=1 // pred_check
      _
    $region3: #{tpu_custom_call.1} parent=1 // pred_check_branch
      %22 = sbr.rel (0) target = $region5
    $region4: #{tpu_custom_call.1} parent=1 // pred_region
      %s24 = ssub.s32 256, 256
      %25 = vsyncadd [#allocation3], %s24
      %s26 = sshll.u32 [#allocation2], 4
      %s27 = int_to_ptr.vmem [resolvable:$true] %s26
      %32 = dma.hbm_to_vmem [thread:$0]  %s0, 256, %s27, [#allocation3], 128, 128, 8
    $region5: #{tpu_custom_call.1} parent=1 // pred_fallthru
      _
    // Predicated region
    $region6: #{tpu_custom_call.1} parent=1 // pred_check
      _
    $region7: #{tpu_custom_call.1} parent=1 // pred_check_branch
      %34 = sbr.rel (0) target = $region9
    $region8: #{tpu_custom_call.1} parent=1 // pred_region
      _
    $region9: #{tpu_custom_call.1} parent=1 // pred_fallthru
      _
    // Predicated region
    $region10: #{tpu_custom_call.1} parent=1 // pred_check
      _
    $region11: #{tpu_custom_call.1} parent=1 // pred_check_branch
      %36 = sbr.rel (0) target = $region13
    $region12: #{tpu_custom_call.1} parent=1 // pred_region
      _
    $region13: #{tpu_custom_call.1} parent=1 // pred_fallthru
      _
    // Predicated region
    $region14: #{tpu_custom_call.1} parent=1 // pred_check
      _
    $region15: #{tpu_custom_call.1} parent=1 // pred_check_branch
      %38 = sbr.rel (0) target = $region17
    $region16: #{tpu_custom_call.1} parent=1 // pred_region
      _
    $region17: #{tpu_custom_call.1} parent=1 // pred_fallthru
      _
    // Predicated region
    $region18: #{tpu_custom_call.1} parent=1 // pred_check
      _
    $region19: #{tpu_custom_call.1} parent=1 // pred_check_branch
      %40 = sbr.rel (0) target = $region21
    $region20: #{tpu_custom_call.1} parent=1 // pred_region
      _
    $region21: #{tpu_custom_call.1} parent=1 // pred_fallthru
      _
    // Predicated region
    $region22: #{tpu_custom_call.1} parent=1 // pred_check
      _
    $region23: #{tpu_custom_call.1} parent=1 // pred_check_branch
      %42 = sbr.rel (0) target = $region25
    $region24: #{tpu_custom_call.1} parent=1 // pred_region
      _
    $region25: #{tpu_custom_call.1} parent=1 // pred_fallthru
      _
    // Predicated region
    $region26: #{tpu_custom_call.1} parent=1 // pred_check
      _
    $region27: #{tpu_custom_call.1} parent=1 // pred_check_branch
      %44 = sbr.rel (0) target = $region29
    $region28: #{tpu_custom_call.1} parent=1 // pred_region
      _
    $region29: #{tpu_custom_call.1} parent=1 // pred_fallthru
      _
    // Predicated region
    $region30: #{tpu_custom_call.1} parent=1 // pred_check
      _
    $region31: #{tpu_custom_call.1} parent=1 // pred_check_branch
      %46 = sbr.rel (0) target = $region33
    $region32: #{tpu_custom_call.1} parent=1 // pred_region
      _
    $region33: #{tpu_custom_call.1} parent=1 // pred_fallthru
      _
    // Predicated region
    $region34: #{tpu_custom_call.1} parent=1 // pred_check
      _
    $region35: #{tpu_custom_call.1} parent=1 // pred_check_branch
      %48 = sbr.rel (0) target = $region37
    $region36: #{tpu_custom_call.1} parent=1 // pred_region
      _
    $region37: #{tpu_custom_call.1} parent=1 // pred_fallthru
      _
    // Predicated region
    $region38: #{tpu_custom_call.1} parent=1 // pred_check
      _
    $region39: #{tpu_custom_call.1} parent=1 // pred_check_branch
      %50 = sbr.rel (0) target = $region41
    $region40: #{tpu_custom_call.1} parent=1 // pred_region
      _
    $region41: #{tpu_custom_call.1} parent=1 // pred_fallthru
      _
    // Predicated region
    $region42: #{tpu_custom_call.1} parent=1 // pred_check
      _
    $region43: #{tpu_custom_call.1} parent=1 // pred_check_branch
      %52 = sbr.rel (0) target = $region45
    $region44: #{tpu_custom_call.1} parent=1 // pred_region
      _
    $region45: #{tpu_custom_call.1} parent=1 // pred_fallthru
      _
    // Predicated region
    $region46: #{tpu_custom_call.1} parent=1 // pred_check
      _
    $region47: #{tpu_custom_call.1} parent=1 // pred_check_branch
      %54 = sbr.rel (0) target = $region49
    $region48: #{tpu_custom_call.1} parent=1 // pred_region
      _
    $region49: #{tpu_custom_call.1} parent=1 // pred_fallthru
      _
    // Predicated region
    $region50: #{tpu_custom_call.1} parent=1 // pred_check
      _
    $region51: #{tpu_custom_call.1} parent=1 // pred_check_branch
      %56 = sbr.rel (0) target = $region53
    $region52: #{tpu_custom_call.1} parent=1 // pred_region
      _
    $region53: #{tpu_custom_call.1} parent=1 // pred_fallthru
      _
    // Predicated region
    $region54: #{tpu_custom_call.1} parent=1 // pred_check
      _
    $region55: #{tpu_custom_call.1} parent=1 // pred_check_branch
      %58 = sbr.rel (0) target = $region57
    $region56: #{tpu_custom_call.1} parent=1 // pred_region
      _
    $region57: #{tpu_custom_call.1} parent=1 // pred_fallthru
      _
    // Predicated region
    $region58: #{tpu_custom_call.1} parent=1 // pred_check
      _
    $region59: #{tpu_custom_call.1} parent=1 // pred_check_branch
      %60 = sbr.rel (0) target = $region61
    $region60: #{tpu_custom_call.1} parent=1 // pred_region
      %61 = dma.done [#allocation3], 256
    $region61: #{tpu_custom_call.1} parent=1 // pred_fallthru
      _
    %v62 = vld [vmem:[#allocation2] sm:$0xff]
    %v63 = vld [vmem:[#allocation2 + $0x8] sm:$0xff]
    %v64 = vld [vmem:[%s1] sm:$0x1]
    %v65 = vld [vmem:[%s1 + $0x1] sm:$0x1]
    %v66 = vld [vmem:[%s2] sm:$0x1]
    %v67 = vld [vmem:[%s3] sm:$0x1]
    %vm68 = vcmask 261120
    %v69 = vsel %vm68, %v62, 0.0
    %70 = vadd.xlane.f32.xlu0 %v69
    %v71 = vpop.xlane.xlu0 %70
    %v72 = vsel %vm68, %v63, 0.0
    %73 = vadd.xlane.f32.xlu0 %v72
    %v74 = vpop.xlane.xlu0 %73
    %v75 = vrcp.pop 32.0
    %v76 = vmul.f32 %v71, %v75
    %v77 = vmul.f32 %v74, %v75
    %v78 = vsub.f32 %v62, %v76
    %v79 = vsub.f32 %v63, %v77
    %v80 = vmul.f32 %v78, %v78
    %v81 = vmul.f32 %v79, %v79
    %v82 = vsel %vm68, %v80, 0.0
    %83 = vadd.xlane.f32.xlu0 %v82
    %v84 = vpop.xlane.xlu0 %83
    %v85 = vsel %vm68, %v81, 0.0
    %86 = vadd.xlane.f32.xlu0 %v85
    %v87 = vpop.xlane.xlu0 %86
    %v88 = vmul.f32 %v84, %v75
    %v89 = vmul.f32 %v87, %v75
    %v90 = vadd.f32 %v88, 1e-12
    %v91 = vadd.f32 %v89, 1e-12
    %v92 = vrsqrt.pop %v90
    %v93 = vrsqrt.pop %v91
    %v94 = vmul.f32 %v78, %v92
    %v95 = vmul.f32 %v79, %v93
    %v97 = vlaneseq
    %v98 = vshrl.u32 %v97, 7
    %v99 = vsub.s32 0, %v98
    %v100 = vrot.slane %v66, %v99
    %v102 = vmul.f32 %v94, %v100
    %v103 = vmul.f32 %v95, %v100
    %v105 = vlaneseq
    %v106 = vshrl.u32 %v105, 7
    %v107 = vsub.s32 0, %v106
    %v108 = vrot.slane %v67, %v107
    %v110 = vadd.f32 %v102, %v108
    %v111 = vadd.f32 %v103, %v108
    %v112 = vld [vmem:[%s6] sm:$0xff]
    %v113 = vld [vmem:[%s6 + $0x8] sm:$0xff]
    %v114 = vld [vmem:[%s6 + $0x10] sm:$0xff]
    %v115 = vld [vmem:[%s6 + $0x18] sm:$0xff]
    %v116 = vld [vmem:[%s7] sm:$0x1]
    %v118 = vlaneseq
    %v119 = vshrl.u32 %v118, 7
    %v120 = vsub.s32 0, %v119
    %v121 = vrot.slane %v116, %v120
    %v124 = vsel %vm68, %v110, 0
    %v127 = vsel %vm68, %v111, 0
    %129 = vmatprep.subr.mxu0 0.0
    %130 = vmatpush1.msra.mxu0 %v112
    %131 = vmatprep.subr.mxu0 0.0
    %132 = vmatpush1.msra.mxu0 %v113
    %133 = vmatprep.subr.mxu0 0.0
    %134 = vmatpush1.msra.mxu0 %v114
    %135 = vmatprep.subr.mxu0 0.0
    %136 = vmatpush1.msra.mxu0 %v115
    %137 = vmatprep.subr.mxu0 0.0
    %138 = vmatpush1.msra.mxu0 0.0
    %139 = vmatprep.subr.mxu0 0.0
    %140 = vmatpush1.msra.mxu0 0.0
    %141 = vmatprep.subr.mxu0 0.0
    %142 = vmatpush1.msra.mxu0 0.0
    %143 = vmatprep.subr.mxu0 0.0
    %144 = vmatpush1.msra.mxu0 0.0
    %145 = vmatprep.subr.mxu0 0.0
    %146 = vmatpush1.msra.mxu0 0.0
    %147 = vmatprep.subr.mxu0 0.0
    %148 = vmatpush1.msra.mxu0 0.0
    %149 = vmatprep.subr.mxu0 0.0
    %150 = vmatpush1.msra.mxu0 0.0
    %151 = vmatprep.subr.mxu0 0.0
    %152 = vmatpush1.msra.mxu0 0.0
    %153 = vmatprep.subr.mxu0 0.0
    %154 = vmatpush1.msra.mxu0 0.0
    %155 = vmatprep.subr.mxu0 0.0
    %156 = vmatpush1.msra.mxu0 0.0
    %157 = vmatprep.subr.mxu0 0.0
    %158 = vmatpush1.msra.mxu0 0.0
    %159 = vmatprep.subr.mxu0 0.0
    %160 = vmatpush1.msra.mxu0 0.0
    %161 = vmatprep.subr.mxu0 0.0
    %162 = vmatpush1.msra.mxu0 0.0
    %163 = vmatprep.subr.mxu0 0.0
    %164 = vmatpush1.msra.mxu0 0.0
    %165 = vmatprep.subr.mxu0 0.0
    %166 = vmatpush1.msra.mxu0 0.0
    %167 = vmatprep.subr.mxu0 0.0
    %168 = vmatpush1.msra.mxu0 0.0
    %169 = vmatprep.subr.mxu0 0.0
    %170 = vmatpush1.msra.mxu0 0.0
    %171 = vmatprep.subr.mxu0 0.0
    %172 = vmatpush1.msra.mxu0 0.0
    %173 = vmatprep.subr.mxu0 0.0
    %174 = vmatpush1.msra.mxu0 0.0
    %175 = vmatprep.subr.mxu0 0.0
    %176 = vmatpush1.msra.mxu0 0.0
    %177 = vmatprep.subr.mxu0 0.0
    %178 = vmatpush1.msra.mxu0 0.0
    %179 = vmatprep.subr.mxu0 0.0
    %180 = vmatpush1.msra.mxu0 0.0
    %181 = vmatprep.subr.mxu0 0.0
    %182 = vmatpush1.msra.mxu0 0.0
    %183 = vmatprep.subr.mxu0 0.0
    %184 = vmatpush1.msra.mxu0 0.0
    %185 = vmatprep.subr.mxu0 0.0
    %186 = vmatpush1.msra.mxu0 0.0
    %187 = vmatprep.subr.mxu0 0.0
    %188 = vmatpush1.msra.mxu0 0.0
    %189 = vmatprep.subr.mxu0 0.0
    %190 = vmatpush1.msra.mxu0 0.0
    %191 = vmatprep.subr.mxu0 0.0
    %192 = vmatpush1.msra.mxu0 0.0
    %193 = vmatprep.mubr.f32.mxu0 0.0
    %194 = vmatmul.mubr.f32.gmra.mrb[0].mxu0 %v124
    %v195 = vpop.f32.mrb[0].mxu0
    %v196 = vadd.f32 %v121, %v195
    %v197 = vpop.f32.mrb[0].mxu0
    %198 = vmatprep.mubr.f32.mxu0 0.0
    %199 = vmatmul.mubr.f32.gmra.mrb[0].mxu0 %v127
    %v200 = vpop.f32.mrb[0].mxu0
    %v201 = vadd.f32 %v121, %v200
    %v202 = vpop.f32.mrb[0].mxu0
    %203 = vdwg.mxu0
    %205 = vrot.lane.b32.xlu0 %v196, 120
    %v206 = vpop.permute.xlu0 %205
    %207 = vrot.lane.b32.xlu0 %v196, 112
    %v208 = vpop.permute.xlu0 %207
    %209 = vrot.lane.b32.xlu0 %v196, 104
    %v210 = vpop.permute.xlu0 %209
    %212 = vrot.lane.b32.xlu0 %v201, 120
    %v213 = vpop.permute.xlu0 %212
    %214 = vrot.lane.b32.xlu0 %v201, 112
    %v215 = vpop.permute.xlu0 %214
    %216 = vrot.lane.b32.xlu0 %v201, 104
    %v217 = vpop.permute.xlu0 %216
    %vm218 = vcmp.gt.f32.partialorder %v64, 0.5
    %vm219 = vcmp.gt.f32.partialorder %v65, 0.5
    %220 = vrot.lane.b32.xlu0 %v196, 96
    %v221 = vpop.permute.xlu0 %220
    %vm222 = vcmask 64512
    %v223 = vsel %vm222, %v196, 0
    %v225 = vsel %vm222, %v221, 0
    %227 = vmatprep.subr.mxu0 0.0
    %228 = vmatpush1.xpose.msra.mxu0 %v225
    %229 = vmatprep.subr.mxu0 0.0
    %230 = vmatpush1.xpose.msra.mxu0 0.0
    %231 = vmatprep.subr.mxu0 0.0
    %232 = vmatpush1.xpose.msra.mxu0 0.0
    %233 = vmatprep.subr.mxu0 0.0
    %234 = vmatpush1.xpose.msra.mxu0 0.0
    %235 = vmatprep.subr.mxu0 0.0
    %236 = vmatpush1.xpose.msra.mxu0 0.0
    %237 = vmatprep.subr.mxu0 0.0
    %238 = vmatpush1.xpose.msra.mxu0 0.0
    %239 = vmatprep.subr.mxu0 0.0
    %240 = vmatpush1.xpose.msra.mxu0 0.0
    %241 = vmatprep.subr.mxu0 0.0
    %242 = vmatpush1.xpose.msra.mxu0 0.0
    %243 = vmatprep.subr.mxu0 0.0
    %244 = vmatpush1.xpose.msra.mxu0 0.0
    %245 = vmatprep.subr.mxu0 0.0
    %246 = vmatpush1.xpose.msra.mxu0 0.0
    %247 = vmatprep.subr.mxu0 0.0
    %248 = vmatpush1.xpose.msra.mxu0 0.0
    %249 = vmatprep.subr.mxu0 0.0
    %250 = vmatpush1.xpose.msra.mxu0 0.0
    %251 = vmatprep.subr.mxu0 0.0
    %252 = vmatpush1.xpose.msra.mxu0 0.0
    %253 = vmatprep.subr.mxu0 0.0
    %254 = vmatpush1.xpose.msra.mxu0 0.0
    %255 = vmatprep.subr.mxu0 0.0
    %256 = vmatpush1.xpose.msra.mxu0 0.0
    %257 = vmatprep.subr.mxu0 0.0
    %258 = vmatpush1.xpose.msra.mxu0 0.0
    %259 = vmatprep.subr.mxu0 0.0
    %260 = vmatpush1.xpose.msra.mxu0 0.0
    %261 = vmatprep.subr.mxu0 0.0
    %262 = vmatpush1.xpose.msra.mxu0 0.0
    %263 = vmatprep.subr.mxu0 0.0
    %264 = vmatpush1.xpose.msra.mxu0 0.0
    %265 = vmatprep.subr.mxu0 0.0
    %266 = vmatpush1.xpose.msra.mxu0 0.0
    %267 = vmatprep.subr.mxu0 0.0
    %268 = vmatpush1.xpose.msra.mxu0 0.0
    %269 = vmatprep.subr.mxu0 0.0
    %270 = vmatpush1.xpose.msra.mxu0 0.0
    %271 = vmatprep.subr.mxu0 0.0
    %272 = vmatpush1.xpose.msra.mxu0 0.0
    %273 = vmatprep.subr.mxu0 0.0
    %274 = vmatpush1.xpose.msra.mxu0 0.0
    %275 = vmatprep.subr.mxu0 0.0
    %276 = vmatpush1.xpose.msra.mxu0 0.0
    %277 = vmatprep.subr.mxu0 0.0
    %278 = vmatpush1.xpose.msra.mxu0 0.0
    %279 = vmatprep.subr.mxu0 0.0
    %280 = vmatpush1.xpose.msra.mxu0 0.0
    %281 = vmatprep.subr.mxu0 0.0
    %282 = vmatpush1.xpose.msra.mxu0 0.0
    %283 = vmatprep.subr.mxu0 0.0
    %284 = vmatpush1.xpose.msra.mxu0 0.0
    %285 = vmatprep.subr.mxu0 0.0
    %286 = vmatpush1.xpose.msra.mxu0 0.0
    %287 = vmatprep.subr.mxu0 0.0
    %288 = vmatpush1.xpose.msra.mxu0 0.0
    %289 = vmatprep.subr.mxu0 0.0
    %290 = vmatpush1.xpose.msra.mxu0 0.0
    %291 = vmatprep.mubr.f32.mxu0 0.0
    %292 = vmatmul.mubr.f32.gmra.mrb[0].mxu0 %v223
    %v293 = vpop.f32.mrb[0].mxu0
    %v294 = vadd.f32 0.0, %v293
    %v295 = vpop.f32.mrb[0].mxu0
    %296 = vdwg.mxu0
    %297 = vrot.lane.b32.xlu0 %v206, 96
    %v298 = vpop.permute.xlu0 %297
    %v299 = vsel %vm222, %v206, 0
    %v301 = vsel %vm222, %v298, 0
    %303 = vmatprep.subr.mxu0 0.0
    %304 = vmatpush1.xpose.msra.mxu0 %v301
    %305 = vmatprep.subr.mxu0 0.0
    %306 = vmatpush1.xpose.msra.mxu0 0.0
    %307 = vmatprep.subr.mxu0 0.0
    %308 = vmatpush1.xpose.msra.mxu0 0.0
    %309 = vmatprep.subr.mxu0 0.0
    %310 = vmatpush1.xpose.msra.mxu0 0.0
    %311 = vmatprep.subr.mxu0 0.0
    %312 = vmatpush1.xpose.msra.mxu0 0.0
    %313 = vmatprep.subr.mxu0 0.0
    %314 = vmatpush1.xpose.msra.mxu0 0.0
    %315 = vmatprep.subr.mxu0 0.0
    %316 = vmatpush1.xpose.msra.mxu0 0.0
    %317 = vmatprep.subr.mxu0 0.0
    %318 = vmatpush1.xpose.msra.mxu0 0.0
    %319 = vmatprep.subr.mxu0 0.0
    %320 = vmatpush1.xpose.msra.mxu0 0.0
    %321 = vmatprep.subr.mxu0 0.0
    %322 = vmatpush1.xpose.msra.mxu0 0.0
    %323 = vmatprep.subr.mxu0 0.0
    %324 = vmatpush1.xpose.msra.mxu0 0.0
    %325 = vmatprep.subr.mxu0 0.0
    %326 = vmatpush1.xpose.msra.mxu0 0.0
    %327 = vmatprep.subr.mxu0 0.0
    %328 = vmatpush1.xpose.msra.mxu0 0.0
    %329 = vmatprep.subr.mxu0 0.0
    %330 = vmatpush1.xpose.msra.mxu0 0.0
    %331 = vmatprep.subr.mxu0 0.0
    %332 = vmatpush1.xpose.msra.mxu0 0.0
    %333 = vmatprep.subr.mxu0 0.0
    %334 = vmatpush1.xpose.msra.mxu0 0.0
    %335 = vmatprep.subr.mxu0 0.0
    %336 = vmatpush1.xpose.msra.mxu0 0.0
    %337 = vmatprep.subr.mxu0 0.0
    %338 = vmatpush1.xpose.msra.mxu0 0.0
    %339 = vmatprep.subr.mxu0 0.0
    %340 = vmatpush1.xpose.msra.mxu0 0.0
    %341 = vmatprep.subr.mxu0 0.0
    %342 = vmatpush1.xpose.msra.mxu0 0.0
    %343 = vmatprep.subr.mxu0 0.0
    %344 = vmatpush1.xpose.msra.mxu0 0.0
    %345 = vmatprep.subr.mxu0 0.0
    %346 = vmatpush1.xpose.msra.mxu0 0.0
    %347 = vmatprep.subr.mxu0 0.0
    %348 = vmatpush1.xpose.msra.mxu0 0.0
    %349 = vmatprep.subr.mxu0 0.0
    %350 = vmatpush1.xpose.msra.mxu0 0.0
    %351 = vmatprep.subr.mxu0 0.0
    %352 = vmatpush1.xpose.msra.mxu0 0.0
    %353 = vmatprep.subr.mxu0 0.0
    %354 = vmatpush1.xpose.msra.mxu0 0.0
    %355 = vmatprep.subr.mxu0 0.0
    %356 = vmatpush1.xpose.msra.mxu0 0.0
    %357 = vmatprep.subr.mxu0 0.0
    %358 = vmatpush1.xpose.msra.mxu0 0.0
    %359 = vmatprep.subr.mxu0 0.0
    %360 = vmatpush1.xpose.msra.mxu0 0.0
    %361 = vmatprep.subr.mxu0 0.0
    %362 = vmatpush1.xpose.msra.mxu0 0.0
    %363 = vmatprep.subr.mxu0 0.0
    %364 = vmatpush1.xpose.msra.mxu0 0.0
    %365 = vmatprep.subr.mxu0 0.0
    %366 = vmatpush1.xpose.msra.mxu0 0.0
    %367 = vmatprep.mubr.f32.mxu0 0.0
    %368 = vmatmul.mubr.f32.gmra.mrb[0].mxu0 %v299
    %v369 = vpop.f32.mrb[0].mxu0
    %v370 = vadd.f32 0.0, %v369
    %v371 = vpop.f32.mrb[0].mxu0
    %372 = vdwg.mxu0
    %373 = vrot.lane.b32.xlu0 %v208, 96
    %v374 = vpop.permute.xlu0 %373
    %v375 = vsel %vm222, %v208, 0
    %v377 = vsel %vm222, %v374, 0
    %379 = vmatprep.subr.mxu0 0.0
    %380 = vmatpush1.xpose.msra.mxu0 %v377
    %381 = vmatprep.subr.mxu0 0.0
    %382 = vmatpush1.xpose.msra.mxu0 0.0
    %383 = vmatprep.subr.mxu0 0.0
    %384 = vmatpush1.xpose.msra.mxu0 0.0
    %385 = vmatprep.subr.mxu0 0.0
    %386 = vmatpush1.xpose.msra.mxu0 0.0
    %387 = vmatprep.subr.mxu0 0.0
    %388 = vmatpush1.xpose.msra.mxu0 0.0
    %389 = vmatprep.subr.mxu0 0.0
    %390 = vmatpush1.xpose.msra.mxu0 0.0
    %391 = vmatprep.subr.mxu0 0.0
    %392 = vmatpush1.xpose.msra.mxu0 0.0
    %393 = vmatprep.subr.mxu0 0.0
    %394 = vmatpush1.xpose.msra.mxu0 0.0
    %395 = vmatprep.subr.mxu0 0.0
    %396 = vmatpush1.xpose.msra.mxu0 0.0
    %397 = vmatprep.subr.mxu0 0.0
    %398 = vmatpush1.xpose.msra.mxu0 0.0
    %399 = vmatprep.subr.mxu0 0.0
    %400 = vmatpush1.xpose.msra.mxu0 0.0
    %401 = vmatprep.subr.mxu0 0.0
    %402 = vmatpush1.xpose.msra.mxu0 0.0
    %403 = vmatprep.subr.mxu0 0.0
    %404 = vmatpush1.xpose.msra.mxu0 0.0
    %405 = vmatprep.subr.mxu0 0.0
    %406 = vmatpush1.xpose.msra.mxu0 0.0
    %407 = vmatprep.subr.mxu0 0.0
    %408 = vmatpush1.xpose.msra.mxu0 0.0
    %409 = vmatprep.subr.mxu0 0.0
    %410 = vmatpush1.xpose.msra.mxu0 0.0
    %411 = vmatprep.subr.mxu0 0.0
    %412 = vmatpush1.xpose.msra.mxu0 0.0
    %413 = vmatprep.subr.mxu0 0.0
    %414 = vmatpush1.xpose.msra.mxu0 0.0
    %415 = vmatprep.subr.mxu0 0.0
    %416 = vmatpush1.xpose.msra.mxu0 0.0
    %417 = vmatprep.subr.mxu0 0.0
    %418 = vmatpush1.xpose.msra.mxu0 0.0
    %419 = vmatprep.subr.mxu0 0.0
    %420 = vmatpush1.xpose.msra.mxu0 0.0
    %421 = vmatprep.subr.mxu0 0.0
    %422 = vmatpush1.xpose.msra.mxu0 0.0
    %423 = vmatprep.subr.mxu0 0.0
    %424 = vmatpush1.xpose.msra.mxu0 0.0
    %425 = vmatprep.subr.mxu0 0.0
    %426 = vmatpush1.xpose.msra.mxu0 0.0
    %427 = vmatprep.subr.mxu0 0.0
    %428 = vmatpush1.xpose.msra.mxu0 0.0
    %429 = vmatprep.subr.mxu0 0.0
    %430 = vmatpush1.xpose.msra.mxu0 0.0
    %431 = vmatprep.subr.mxu0 0.0
    %432 = vmatpush1.xpose.msra.mxu0 0.0
    %433 = vmatprep.subr.mxu0 0.0
    %434 = vmatpush1.xpose.msra.mxu0 0.0
    %435 = vmatprep.subr.mxu0 0.0
    %436 = vmatpush1.xpose.msra.mxu0 0.0
    %437 = vmatprep.subr.mxu0 0.0
    %438 = vmatpush1.xpose.msra.mxu0 0.0
    %439 = vmatprep.subr.mxu0 0.0
    %440 = vmatpush1.xpose.msra.mxu0 0.0
    %441 = vmatprep.subr.mxu0 0.0
    %442 = vmatpush1.xpose.msra.mxu0 0.0
    %443 = vmatprep.mubr.f32.mxu0 0.0
    %444 = vmatmul.mubr.f32.gmra.mrb[0].mxu0 %v375
    %v445 = vpop.f32.mrb[0].mxu0
    %v446 = vadd.f32 0.0, %v445
    %v447 = vpop.f32.mrb[0].mxu0
    %448 = vdwg.mxu0
    %449 = vrot.lane.b32.xlu0 %v210, 96
    %v450 = vpop.permute.xlu0 %449
    %v451 = vsel %vm222, %v210, 0
    %v453 = vsel %vm222, %v450, 0
    %455 = vmatprep.subr.mxu0 0.0
    %456 = vmatpush1.xpose.msra.mxu0 %v453
    %457 = vmatprep.subr.mxu0 0.0
    %458 = vmatpush1.xpose.msra.mxu0 0.0
    %459 = vmatprep.subr.mxu0 0.0
    %460 = vmatpush1.xpose.msra.mxu0 0.0
    %461 = vmatprep.subr.mxu0 0.0
    %462 = vmatpush1.xpose.msra.mxu0 0.0
    %463 = vmatprep.subr.mxu0 0.0
    %464 = vmatpush1.xpose.msra.mxu0 0.0
    %465 = vmatprep.subr.mxu0 0.0
    %466 = vmatpush1.xpose.msra.mxu0 0.0
    %467 = vmatprep.subr.mxu0 0.0
    %468 = vmatpush1.xpose.msra.mxu0 0.0
    %469 = vmatprep.subr.mxu0 0.0
    %470 = vmatpush1.xpose.msra.mxu0 0.0
    %471 = vmatprep.subr.mxu0 0.0
    %472 = vmatpush1.xpose.msra.mxu0 0.0
    %473 = vmatprep.subr.mxu0 0.0
    %474 = vmatpush1.xpose.msra.mxu0 0.0
    %475 = vmatprep.subr.mxu0 0.0
    %476 = vmatpush1.xpose.msra.mxu0 0.0
    %477 = vmatprep.subr.mxu0 0.0
    %478 = vmatpush1.xpose.msra.mxu0 0.0
    %479 = vmatprep.subr.mxu0 0.0
    %480 = vmatpush1.xpose.msra.mxu0 0.0
    %481 = vmatprep.subr.mxu0 0.0
    %482 = vmatpush1.xpose.msra.mxu0 0.0
    %483 = vmatprep.subr.mxu0 0.0
    %484 = vmatpush1.xpose.msra.mxu0 0.0
    %485 = vmatprep.subr.mxu0 0.0
    %486 = vmatpush1.xpose.msra.mxu0 0.0
    %487 = vmatprep.subr.mxu0 0.0
    %488 = vmatpush1.xpose.msra.mxu0 0.0
    %489 = vmatprep.subr.mxu0 0.0
    %490 = vmatpush1.xpose.msra.mxu0 0.0
    %491 = vmatprep.subr.mxu0 0.0
    %492 = vmatpush1.xpose.msra.mxu0 0.0
    %493 = vmatprep.subr.mxu0 0.0
    %494 = vmatpush1.xpose.msra.mxu0 0.0
    %495 = vmatprep.subr.mxu0 0.0
    %496 = vmatpush1.xpose.msra.mxu0 0.0
    %497 = vmatprep.subr.mxu0 0.0
    %498 = vmatpush1.xpose.msra.mxu0 0.0
    %499 = vmatprep.subr.mxu0 0.0
    %500 = vmatpush1.xpose.msra.mxu0 0.0
    %501 = vmatprep.subr.mxu0 0.0
    %502 = vmatpush1.xpose.msra.mxu0 0.0
    %503 = vmatprep.subr.mxu0 0.0
    %504 = vmatpush1.xpose.msra.mxu0 0.0
    %505 = vmatprep.subr.mxu0 0.0
    %506 = vmatpush1.xpose.msra.mxu0 0.0
    %507 = vmatprep.subr.mxu0 0.0
    %508 = vmatpush1.xpose.msra.mxu0 0.0
    %509 = vmatprep.subr.mxu0 0.0
    %510 = vmatpush1.xpose.msra.mxu0 0.0
    %511 = vmatprep.subr.mxu0 0.0
    %512 = vmatpush1.xpose.msra.mxu0 0.0
    %513 = vmatprep.subr.mxu0 0.0
    %514 = vmatpush1.xpose.msra.mxu0 0.0
    %515 = vmatprep.subr.mxu0 0.0
    %516 = vmatpush1.xpose.msra.mxu0 0.0
    %517 = vmatprep.subr.mxu0 0.0
    %518 = vmatpush1.xpose.msra.mxu0 0.0
    %519 = vmatprep.mubr.f32.mxu0 0.0
    %520 = vmatmul.mubr.f32.gmra.mrb[0].mxu0 %v451
    %v521 = vpop.f32.mrb[0].mxu0
    %v522 = vadd.f32 0.0, %v521
    %v523 = vpop.f32.mrb[0].mxu0
    %524 = vdwg.mxu0
    %525 = vrot.lane.b32.xlu0 %v201, 96
    %v526 = vpop.permute.xlu0 %525
    %v527 = vsel %vm222, %v201, 0
    %v529 = vsel %vm222, %v526, 0
    %531 = vmatprep.subr.mxu0 0.0
    %532 = vmatpush1.xpose.msra.mxu0 %v529
    %533 = vmatprep.subr.mxu0 0.0
    %534 = vmatpush1.xpose.msra.mxu0 0.0
    %535 = vmatprep.subr.mxu0 0.0
    %536 = vmatpush1.xpose.msra.mxu0 0.0
    %537 = vmatprep.subr.mxu0 0.0
    %538 = vmatpush1.xpose.msra.mxu0 0.0
    %539 = vmatprep.subr.mxu0 0.0
    %540 = vmatpush1.xpose.msra.mxu0 0.0
    %541 = vmatprep.subr.mxu0 0.0
    %542 = vmatpush1.xpose.msra.mxu0 0.0
    %543 = vmatprep.subr.mxu0 0.0
    %544 = vmatpush1.xpose.msra.mxu0 0.0
    %545 = vmatprep.subr.mxu0 0.0
    %546 = vmatpush1.xpose.msra.mxu0 0.0
    %547 = vmatprep.subr.mxu0 0.0
    %548 = vmatpush1.xpose.msra.mxu0 0.0
    %549 = vmatprep.subr.mxu0 0.0
    %550 = vmatpush1.xpose.msra.mxu0 0.0
    %551 = vmatprep.subr.mxu0 0.0
    %552 = vmatpush1.xpose.msra.mxu0 0.0
    %553 = vmatprep.subr.mxu0 0.0
    %554 = vmatpush1.xpose.msra.mxu0 0.0
    %555 = vmatprep.subr.mxu0 0.0
    %556 = vmatpush1.xpose.msra.mxu0 0.0
    %557 = vmatprep.subr.mxu0 0.0
    %558 = vmatpush1.xpose.msra.mxu0 0.0
    %559 = vmatprep.subr.mxu0 0.0
    %560 = vmatpush1.xpose.msra.mxu0 0.0
    %561 = vmatprep.subr.mxu0 0.0
    %562 = vmatpush1.xpose.msra.mxu0 0.0
    %563 = vmatprep.subr.mxu0 0.0
    %564 = vmatpush1.xpose.msra.mxu0 0.0
    %565 = vmatprep.subr.mxu0 0.0
    %566 = vmatpush1.xpose.msra.mxu0 0.0
    %567 = vmatprep.subr.mxu0 0.0
    %568 = vmatpush1.xpose.msra.mxu0 0.0
    %569 = vmatprep.subr.mxu0 0.0
    %570 = vmatpush1.xpose.msra.mxu0 0.0
    %571 = vmatprep.subr.mxu0 0.0
    %572 = vmatpush1.xpose.msra.mxu0 0.0
    %573 = vmatprep.subr.mxu0 0.0
    %574 = vmatpush1.xpose.msra.mxu0 0.0
    %575 = vmatprep.subr.mxu0 0.0
    %576 = vmatpush1.xpose.msra.mxu0 0.0
    %577 = vmatprep.subr.mxu0 0.0
    %578 = vmatpush1.xpose.msra.mxu0 0.0
    %579 = vmatprep.subr.mxu0 0.0
    %580 = vmatpush1.xpose.msra.mxu0 0.0
    %581 = vmatprep.subr.mxu0 0.0
    %582 = vmatpush1.xpose.msra.mxu0 0.0
    %583 = vmatprep.subr.mxu0 0.0
    %584 = vmatpush1.xpose.msra.mxu0 0.0
    %585 = vmatprep.subr.mxu0 0.0
    %586 = vmatpush1.xpose.msra.mxu0 0.0
    %587 = vmatprep.subr.mxu0 0.0
    %588 = vmatpush1.xpose.msra.mxu0 0.0
    %589 = vmatprep.subr.mxu0 0.0
    %590 = vmatpush1.xpose.msra.mxu0 0.0
    %591 = vmatprep.subr.mxu0 0.0
    %592 = vmatpush1.xpose.msra.mxu0 0.0
    %593 = vmatprep.subr.mxu0 0.0
    %594 = vmatpush1.xpose.msra.mxu0 0.0
    %595 = vmatprep.mubr.f32.mxu0 0.0
    %596 = vmatmul.mubr.f32.gmra.mrb[0].mxu0 %v527
    %v597 = vpop.f32.mrb[0].mxu0
    %v598 = vadd.f32 0.0, %v597
    %v599 = vpop.f32.mrb[0].mxu0
    %600 = vdwg.mxu0
    %601 = vrot.lane.b32.xlu0 %v213, 96
    %v602 = vpop.permute.xlu0 %601
    %v603 = vsel %vm222, %v213, 0
    %v605 = vsel %vm222, %v602, 0
    %607 = vmatprep.subr.mxu0 0.0
    %608 = vmatpush1.xpose.msra.mxu0 %v605
    %609 = vmatprep.subr.mxu0 0.0
    %610 = vmatpush1.xpose.msra.mxu0 0.0
    %611 = vmatprep.subr.mxu0 0.0
    %612 = vmatpush1.xpose.msra.mxu0 0.0
    %613 = vmatprep.subr.mxu0 0.0
    %614 = vmatpush1.xpose.msra.mxu0 0.0
    %615 = vmatprep.subr.mxu0 0.0
    %616 = vmatpush1.xpose.msra.mxu0 0.0
    %617 = vmatprep.subr.mxu0 0.0
    %618 = vmatpush1.xpose.msra.mxu0 0.0
    %619 = vmatprep.subr.mxu0 0.0
    %620 = vmatpush1.xpose.msra.mxu0 0.0
    %621 = vmatprep.subr.mxu0 0.0
    %622 = vmatpush1.xpose.msra.mxu0 0.0
    %623 = vmatprep.subr.mxu0 0.0
    %624 = vmatpush1.xpose.msra.mxu0 0.0
    %625 = vmatprep.subr.mxu0 0.0
    %626 = vmatpush1.xpose.msra.mxu0 0.0
    %627 = vmatprep.subr.mxu0 0.0
    %628 = vmatpush1.xpose.msra.mxu0 0.0
    %629 = vmatprep.subr.mxu0 0.0
    %630 = vmatpush1.xpose.msra.mxu0 0.0
    %631 = vmatprep.subr.mxu0 0.0
    %632 = vmatpush1.xpose.msra.mxu0 0.0
    %633 = vmatprep.subr.mxu0 0.0
    %634 = vmatpush1.xpose.msra.mxu0 0.0
    %635 = vmatprep.subr.mxu0 0.0
    %636 = vmatpush1.xpose.msra.mxu0 0.0
    %637 = vmatprep.subr.mxu0 0.0
    %638 = vmatpush1.xpose.msra.mxu0 0.0
    %639 = vmatprep.subr.mxu0 0.0
    %640 = vmatpush1.xpose.msra.mxu0 0.0
    %641 = vmatprep.subr.mxu0 0.0
    %642 = vmatpush1.xpose.msra.mxu0 0.0
    %643 = vmatprep.subr.mxu0 0.0
    %644 = vmatpush1.xpose.msra.mxu0 0.0
    %645 = vmatprep.subr.mxu0 0.0
    %646 = vmatpush1.xpose.msra.mxu0 0.0
    %647 = vmatprep.subr.mxu0 0.0
    %648 = vmatpush1.xpose.msra.mxu0 0.0
    %649 = vmatprep.subr.mxu0 0.0
    %650 = vmatpush1.xpose.msra.mxu0 0.0
    %651 = vmatprep.subr.mxu0 0.0
    %652 = vmatpush1.xpose.msra.mxu0 0.0
    %653 = vmatprep.subr.mxu0 0.0
    %654 = vmatpush1.xpose.msra.mxu0 0.0
    %655 = vmatprep.subr.mxu0 0.0
    %656 = vmatpush1.xpose.msra.mxu0 0.0
    %657 = vmatprep.subr.mxu0 0.0
    %658 = vmatpush1.xpose.msra.mxu0 0.0
    %659 = vmatprep.subr.mxu0 0.0
    %660 = vmatpush1.xpose.msra.mxu0 0.0
    %661 = vmatprep.subr.mxu0 0.0
    %662 = vmatpush1.xpose.msra.mxu0 0.0
    %663 = vmatprep.subr.mxu0 0.0
    %664 = vmatpush1.xpose.msra.mxu0 0.0
    %665 = vmatprep.subr.mxu0 0.0
    %666 = vmatpush1.xpose.msra.mxu0 0.0
    %667 = vmatprep.subr.mxu0 0.0
    %668 = vmatpush1.xpose.msra.mxu0 0.0
    %669 = vmatprep.subr.mxu0 0.0
    %670 = vmatpush1.xpose.msra.mxu0 0.0
    %671 = vmatprep.mubr.f32.mxu0 0.0
    %672 = vmatmul.mubr.f32.gmra.mrb[0].mxu0 %v603
    %v673 = vpop.f32.mrb[0].mxu0
    %v674 = vadd.f32 0.0, %v673
    %v675 = vpop.f32.mrb[0].mxu0
    %676 = vdwg.mxu0
    %677 = vrot.lane.b32.xlu0 %v215, 96
    %v678 = vpop.permute.xlu0 %677
    %v679 = vsel %vm222, %v215, 0
    %v681 = vsel %vm222, %v678, 0
    %683 = vmatprep.subr.mxu0 0.0
    %684 = vmatpush1.xpose.msra.mxu0 %v681
    %685 = vmatprep.subr.mxu0 0.0
    %686 = vmatpush1.xpose.msra.mxu0 0.0
    %687 = vmatprep.subr.mxu0 0.0
    %688 = vmatpush1.xpose.msra.mxu0 0.0
    %689 = vmatprep.subr.mxu0 0.0
    %690 = vmatpush1.xpose.msra.mxu0 0.0
    %691 = vmatprep.subr.mxu0 0.0
    %692 = vmatpush1.xpose.msra.mxu0 0.0
    %693 = vmatprep.subr.mxu0 0.0
    %694 = vmatpush1.xpose.msra.mxu0 0.0
    %695 = vmatprep.subr.mxu0 0.0
    %696 = vmatpush1.xpose.msra.mxu0 0.0
    %697 = vmatprep.subr.mxu0 0.0
    %698 = vmatpush1.xpose.msra.mxu0 0.0
    %699 = vmatprep.subr.mxu0 0.0
    %700 = vmatpush1.xpose.msra.mxu0 0.0
    %701 = vmatprep.subr.mxu0 0.0
    %702 = vmatpush1.xpose.msra.mxu0 0.0
    %703 = vmatprep.subr.mxu0 0.0
    %704 = vmatpush1.xpose.msra.mxu0 0.0
    %705 = vmatprep.subr.mxu0 0.0
    %706 = vmatpush1.xpose.msra.mxu0 0.0
    %707 = vmatprep.subr.mxu0 0.0
    %708 = vmatpush1.xpose.msra.mxu0 0.0
    %709 = vmatprep.subr.mxu0 0.0
    %710 = vmatpush1.xpose.msra.mxu0 0.0
    %711 = vmatprep.subr.mxu0 0.0
    %712 = vmatpush1.xpose.msra.mxu0 0.0
    %713 = vmatprep.subr.mxu0 0.0
    %714 = vmatpush1.xpose.msra.mxu0 0.0
    %715 = vmatprep.subr.mxu0 0.0
    %716 = vmatpush1.xpose.msra.mxu0 0.0
    %717 = vmatprep.subr.mxu0 0.0
    %718 = vmatpush1.xpose.msra.mxu0 0.0
    %719 = vmatprep.subr.mxu0 0.0
    %720 = vmatpush1.xpose.msra.mxu0 0.0
    %721 = vmatprep.subr.mxu0 0.0
    %722 = vmatpush1.xpose.msra.mxu0 0.0
    %723 = vmatprep.subr.mxu0 0.0
    %724 = vmatpush1.xpose.msra.mxu0 0.0
    %725 = vmatprep.subr.mxu0 0.0
    %726 = vmatpush1.xpose.msra.mxu0 0.0
    %727 = vmatprep.subr.mxu0 0.0
    %728 = vmatpush1.xpose.msra.mxu0 0.0
    %729 = vmatprep.subr.mxu0 0.0
    %730 = vmatpush1.xpose.msra.mxu0 0.0
    %731 = vmatprep.subr.mxu0 0.0
    %732 = vmatpush1.xpose.msra.mxu0 0.0
    %733 = vmatprep.subr.mxu0 0.0
    %734 = vmatpush1.xpose.msra.mxu0 0.0
    %735 = vmatprep.subr.mxu0 0.0
    %736 = vmatpush1.xpose.msra.mxu0 0.0
    %737 = vmatprep.subr.mxu0 0.0
    %738 = vmatpush1.xpose.msra.mxu0 0.0
    %739 = vmatprep.subr.mxu0 0.0
    %740 = vmatpush1.xpose.msra.mxu0 0.0
    %741 = vmatprep.subr.mxu0 0.0
    %742 = vmatpush1.xpose.msra.mxu0 0.0
    %743 = vmatprep.subr.mxu0 0.0
    %744 = vmatpush1.xpose.msra.mxu0 0.0
    %745 = vmatprep.subr.mxu0 0.0
    %746 = vmatpush1.xpose.msra.mxu0 0.0
    %747 = vmatprep.mubr.f32.mxu0 0.0
    %748 = vmatmul.mubr.f32.gmra.mrb[0].mxu0 %v679
    %v749 = vpop.f32.mrb[0].mxu0
    %v750 = vadd.f32 0.0, %v749
    %v751 = vpop.f32.mrb[0].mxu0
    %752 = vdwg.mxu0
    %753 = vrot.lane.b32.xlu0 %v217, 96
    %v754 = vpop.permute.xlu0 %753
    %v755 = vsel %vm222, %v217, 0
    %v757 = vsel %vm222, %v754, 0
    %759 = vmatprep.subr.mxu0 0.0
    %760 = vmatpush1.xpose.msra.mxu0 %v757
    %761 = vmatprep.subr.mxu0 0.0
    %762 = vmatpush1.xpose.msra.mxu0 0.0
    %763 = vmatprep.subr.mxu0 0.0
    %764 = vmatpush1.xpose.msra.mxu0 0.0
    %765 = vmatprep.subr.mxu0 0.0
    %766 = vmatpush1.xpose.msra.mxu0 0.0
    %767 = vmatprep.subr.mxu0 0.0
    %768 = vmatpush1.xpose.msra.mxu0 0.0
    %769 = vmatprep.subr.mxu0 0.0
    %770 = vmatpush1.xpose.msra.mxu0 0.0
    %771 = vmatprep.subr.mxu0 0.0
    %772 = vmatpush1.xpose.msra.mxu0 0.0
    %773 = vmatprep.subr.mxu0 0.0
    %774 = vmatpush1.xpose.msra.mxu0 0.0
    %775 = vmatprep.subr.mxu0 0.0
    %776 = vmatpush1.xpose.msra.mxu0 0.0
    %777 = vmatprep.subr.mxu0 0.0
    %778 = vmatpush1.xpose.msra.mxu0 0.0
    %779 = vmatprep.subr.mxu0 0.0
    %780 = vmatpush1.xpose.msra.mxu0 0.0
    %781 = vmatprep.subr.mxu0 0.0
    %782 = vmatpush1.xpose.msra.mxu0 0.0
    %783 = vmatprep.subr.mxu0 0.0
    %784 = vmatpush1.xpose.msra.mxu0 0.0
    %785 = vmatprep.subr.mxu0 0.0
    %786 = vmatpush1.xpose.msra.mxu0 0.0
    %787 = vmatprep.subr.mxu0 0.0
    %788 = vmatpush1.xpose.msra.mxu0 0.0
    %789 = vmatprep.subr.mxu0 0.0
    %790 = vmatpush1.xpose.msra.mxu0 0.0
    %791 = vmatprep.subr.mxu0 0.0
    %792 = vmatpush1.xpose.msra.mxu0 0.0
    %793 = vmatprep.subr.mxu0 0.0
    %794 = vmatpush1.xpose.msra.mxu0 0.0
    %795 = vmatprep.subr.mxu0 0.0
    %796 = vmatpush1.xpose.msra.mxu0 0.0
    %797 = vmatprep.subr.mxu0 0.0
    %798 = vmatpush1.xpose.msra.mxu0 0.0
    %799 = vmatprep.subr.mxu0 0.0
    %800 = vmatpush1.xpose.msra.mxu0 0.0
    %801 = vmatprep.subr.mxu0 0.0
    %802 = vmatpush1.xpose.msra.mxu0 0.0
    %803 = vmatprep.subr.mxu0 0.0
    %804 = vmatpush1.xpose.msra.mxu0 0.0
    %805 = vmatprep.subr.mxu0 0.0
    %806 = vmatpush1.xpose.msra.mxu0 0.0
    %807 = vmatprep.subr.mxu0 0.0
    %808 = vmatpush1.xpose.msra.mxu0 0.0
    %809 = vmatprep.subr.mxu0 0.0
    %810 = vmatpush1.xpose.msra.mxu0 0.0
    %811 = vmatprep.subr.mxu0 0.0
    %812 = vmatpush1.xpose.msra.mxu0 0.0
    %813 = vmatprep.subr.mxu0 0.0
    %814 = vmatpush1.xpose.msra.mxu0 0.0
    %815 = vmatprep.subr.mxu0 0.0
    %816 = vmatpush1.xpose.msra.mxu0 0.0
    %817 = vmatprep.subr.mxu0 0.0
    %818 = vmatpush1.xpose.msra.mxu0 0.0
    %819 = vmatprep.subr.mxu0 0.0
    %820 = vmatpush1.xpose.msra.mxu0 0.0
    %821 = vmatprep.subr.mxu0 0.0
    %822 = vmatpush1.xpose.msra.mxu0 0.0
    %823 = vmatprep.mubr.f32.mxu0 0.0
    %824 = vmatmul.mubr.f32.gmra.mrb[0].mxu0 %v755
    %v825 = vpop.f32.mrb[0].mxu0
    %v826 = vadd.f32 0.0, %v825
    %v827 = vpop.f32.mrb[0].mxu0
    %828 = vdwg.mxu0
    %v829 = vmul.f32 %v294, 0.35355338
    %v830 = vmul.f32 %v370, 0.35355338
    %v831 = vmul.f32 %v446, 0.35355338
    %v832 = vmul.f32 %v522, 0.35355338
    %v833 = vmul.f32 %v598, 0.35355338
    %v834 = vmul.f32 %v674, 0.35355338
    %v835 = vmul.f32 %v750, 0.35355338
    %v836 = vmul.f32 %v826, 0.35355338
    %v837 = vsel %vm218, 1, 0
    %v838 = vsel %vm219, 1, 0
    %v839 = vlaneseq
    %v840 = vshrl.u32 %v839, 7
    %v841 = vsub.s32 0, %v840
    %v842 = vrot.slane %v837, %v841
    %v843 = vlaneseq
    %v844 = vshrl.u32 %v843, 7
    %v845 = vsub.s32 0, %v844
    %v846 = vrot.slane %v838, %v845
    %vm847 = vcmp.eq.s32.totalorder %v842, 1
    %vm848 = vcmp.eq.s32.totalorder %v846, 1
    %v849 = vsel %vm847, %v829, -1e+30
    %v850 = vsel %vm847, %v830, -1e+30
    %v851 = vsel %vm847, %v831, -1e+30
    %v852 = vsel %vm847, %v832, -1e+30
    %v853 = vsel %vm848, %v833, -1e+30
    %v854 = vsel %vm848, %v834, -1e+30
    %v855 = vsel %vm848, %v835, -1e+30
    %v856 = vsel %vm848, %v836, -1e+30
    %v857 = vsel %vm222, %v849, -inf
    %858 = vmax.xlane.f32.xlu0 %v857
    %v859 = vpop.xlane.xlu0 %858
    %v860 = vsel %vm222, %v850, -inf
    %861 = vmax.xlane.f32.xlu0 %v860
    %v862 = vpop.xlane.xlu0 %861
    %v863 = vsel %vm222, %v851, -inf
    %864 = vmax.xlane.f32.xlu0 %v863
    %v865 = vpop.xlane.xlu0 %864
    %v866 = vsel %vm222, %v852, -inf
    %867 = vmax.xlane.f32.xlu0 %v866
    %v868 = vpop.xlane.xlu0 %867
    %v869 = vsel %vm222, %v853, -inf
    %870 = vmax.xlane.f32.xlu0 %v869
    %v871 = vpop.xlane.xlu0 %870
    %v872 = vsel %vm222, %v854, -inf
    %873 = vmax.xlane.f32.xlu0 %v872
    %v874 = vpop.xlane.xlu0 %873
    %v875 = vsel %vm222, %v855, -inf
    %876 = vmax.xlane.f32.xlu0 %v875
    %v877 = vpop.xlane.xlu0 %876
    %v878 = vsel %vm222, %v856, -inf
    %879 = vmax.xlane.f32.xlu0 %v878
    %v880 = vpop.xlane.xlu0 %879
    %v881 = vsub.f32 %v849, %v859
    %v882 = vsub.f32 %v850, %v862
    %v883 = vsub.f32 %v851, %v865
    %v884 = vsub.f32 %v852, %v868
    %v885 = vsub.f32 %v853, %v871
    %v886 = vsub.f32 %v854, %v874
    %v887 = vsub.f32 %v855, %v877
    %v888 = vsub.f32 %v856, %v880
    %v889 = vmul.f32 %v881, 1.442695
    %v890 = vpow.pop %v889
    %v891 = vmul.f32 %v882, 1.442695
    %v892 = vpow.pop %v891
    %v893 = vmul.f32 %v883, 1.442695
    %v894 = vpow.pop %v893
    %v895 = vmul.f32 %v884, 1.442695
    %v896 = vpow.pop %v895
    %v897 = vmul.f32 %v885, 1.442695
    %v898 = vpow.pop %v897
    %v899 = vmul.f32 %v886, 1.442695
    %v900 = vpow.pop %v899
    %v901 = vmul.f32 %v887, 1.442695
    %v902 = vpow.pop %v901
    %v903 = vmul.f32 %v888, 1.442695
    %v904 = vpow.pop %v903
    %v905 = vsel %vm222, %v890, 0.0
    %906 = vadd.xlane.f32.xlu0 %v905
    %v907 = vpop.xlane.xlu0 %906
    %v908 = vsel %vm222, %v892, 0.0
    %909 = vadd.xlane.f32.xlu0 %v908
    %v910 = vpop.xlane.xlu0 %909
    %v911 = vsel %vm222, %v894, 0.0
    %912 = vadd.xlane.f32.xlu0 %v911
    %v913 = vpop.xlane.xlu0 %912
    %v914 = vsel %vm222, %v896, 0.0
    %915 = vadd.xlane.f32.xlu0 %v914
    %v916 = vpop.xlane.xlu0 %915
    %v917 = vsel %vm222, %v898, 0.0
    %918 = vadd.xlane.f32.xlu0 %v917
    %v919 = vpop.xlane.xlu0 %918
    %v920 = vsel %vm222, %v900, 0.0
    %921 = vadd.xlane.f32.xlu0 %v920
    %v922 = vpop.xlane.xlu0 %921
    %v923 = vsel %vm222, %v902, 0.0
    %924 = vadd.xlane.f32.xlu0 %v923
    %v925 = vpop.xlane.xlu0 %924
    %v926 = vsel %vm222, %v904, 0.0
    %927 = vadd.xlane.f32.xlu0 %v926
    %v928 = vpop.xlane.xlu0 %927
    %v929 = vrcp.pop %v907
    %v930 = vrcp.pop %v910
    %v931 = vrcp.pop %v913
    %v932 = vrcp.pop %v916
    %v933 = vrcp.pop %v919
    %v934 = vrcp.pop %v922
    %v935 = vrcp.pop %v925
    %v936 = vrcp.pop %v928
    %v937 = vmul.f32 %v890, %v929
    %v938 = vmul.f32 %v892, %v930
    %v939 = vmul.f32 %v894, %v931
    %v940 = vmul.f32 %v896, %v932
    %v941 = vmul.f32 %v898, %v933
    %v942 = vmul.f32 %v900, %v934
    %v943 = vmul.f32 %v902, %v935
    %v944 = vmul.f32 %v904, %v936
    %v945 = vsel %vm847, %v937, 0.0
    %v946 = vsel %vm847, %v938, 0.0
    %v947 = vsel %vm847, %v939, 0.0
    %v948 = vsel %vm847, %v940, 0.0
    %v949 = vsel %vm848, %v941, 0.0
    %v950 = vsel %vm848, %v942, 0.0
    %v951 = vsel %vm848, %v943, 0.0
    %v952 = vsel %vm848, %v944, 0.0
    %953 = vrot.lane.b32.xlu0 %v196, 64
    %v954 = vpop.permute.xlu0 %953
    %v957 = vsel %vm222, %v945, 0
    %959 = vmatprep.subr.mxu0 0.0
    %960 = vmatpush1.msra.mxu0 %v954
    %961 = vmatprep.subr.mxu0 0.0
    %962 = vmatpush1.msra.mxu0 0.0
    %963 = vmatprep.subr.mxu0 0.0
    %964 = vmatpush1.msra.mxu0 0.0
    %965 = vmatprep.subr.mxu0 0.0
    %966 = vmatpush1.msra.mxu0 0.0
    %967 = vmatprep.subr.mxu0 0.0
    %968 = vmatpush1.msra.mxu0 0.0
    %969 = vmatprep.subr.mxu0 0.0
    %970 = vmatpush1.msra.mxu0 0.0
    %971 = vmatprep.subr.mxu0 0.0
    %972 = vmatpush1.msra.mxu0 0.0
    %973 = vmatprep.subr.mxu0 0.0
    %974 = vmatpush1.msra.mxu0 0.0
    %975 = vmatprep.subr.mxu0 0.0
    %976 = vmatpush1.msra.mxu0 0.0
    %977 = vmatprep.subr.mxu0 0.0
    %978 = vmatpush1.msra.mxu0 0.0
    %979 = vmatprep.subr.mxu0 0.0
    %980 = vmatpush1.msra.mxu0 0.0
    %981 = vmatprep.subr.mxu0 0.0
    %982 = vmatpush1.msra.mxu0 0.0
    %983 = vmatprep.subr.mxu0 0.0
    %984 = vmatpush1.msra.mxu0 0.0
    %985 = vmatprep.subr.mxu0 0.0
    %986 = vmatpush1.msra.mxu0 0.0
    %987 = vmatprep.subr.mxu0 0.0
    %988 = vmatpush1.msra.mxu0 0.0
    %989 = vmatprep.subr.mxu0 0.0
    %990 = vmatpush1.msra.mxu0 0.0
    %991 = vmatprep.subr.mxu0 0.0
    %992 = vmatpush1.msra.mxu0 0.0
    %993 = vmatprep.subr.mxu0 0.0
    %994 = vmatpush1.msra.mxu0 0.0
    %995 = vmatprep.subr.mxu0 0.0
    %996 = vmatpush1.msra.mxu0 0.0
    %997 = vmatprep.subr.mxu0 0.0
    %998 = vmatpush1.msra.mxu0 0.0
    %999 = vmatprep.subr.mxu0 0.0
    %1000 = vmatpush1.msra.mxu0 0.0
    %1001 = vmatprep.subr.mxu0 0.0
    %1002 = vmatpush1.msra.mxu0 0.0
    %1003 = vmatprep.subr.mxu0 0.0
    %1004 = vmatpush1.msra.mxu0 0.0
    %1005 = vmatprep.subr.mxu0 0.0
    %1006 = vmatpush1.msra.mxu0 0.0
    %1007 = vmatprep.subr.mxu0 0.0
    %1008 = vmatpush1.msra.mxu0 0.0
    %1009 = vmatprep.subr.mxu0 0.0
    %1010 = vmatpush1.msra.mxu0 0.0
    %1011 = vmatprep.subr.mxu0 0.0
    %1012 = vmatpush1.msra.mxu0 0.0
    %1013 = vmatprep.subr.mxu0 0.0
    %1014 = vmatpush1.msra.mxu0 0.0
    %1015 = vmatprep.subr.mxu0 0.0
    %1016 = vmatpush1.msra.mxu0 0.0
    %1017 = vmatprep.subr.mxu0 0.0
    %1018 = vmatpush1.msra.mxu0 0.0
    %1019 = vmatprep.subr.mxu0 0.0
    %1020 = vmatpush1.msra.mxu0 0.0
    %1021 = vmatprep.subr.mxu0 0.0
    %1022 = vmatpush1.msra.mxu0 0.0
    %1023 = vmatprep.mubr.f32.mxu0 0.0
    %1024 = vmatmul.mubr.f32.gmra.mrb[0].mxu0 %v957
    %v1025 = vpop.f32.mrb[0].mxu0
    %v1026 = vadd.f32 0.0, %v1025
    %v1027 = vpop.f32.mrb[0].mxu0
    %1028 = vdwg.mxu0
    %1029 = vrot.lane.b32.xlu0 %v206, 64
    %v1030 = vpop.permute.xlu0 %1029
    %v1033 = vsel %vm222, %v946, 0
    %1035 = vmatprep.subr.mxu0 0.0
    %1036 = vmatpush1.msra.mxu0 %v1030
    %1037 = vmatprep.subr.mxu0 0.0
    %1038 = vmatpush1.msra.mxu0 0.0
    %1039 = vmatprep.subr.mxu0 0.0
    %1040 = vmatpush1.msra.mxu0 0.0
    %1041 = vmatprep.subr.mxu0 0.0
    %1042 = vmatpush1.msra.mxu0 0.0
    %1043 = vmatprep.subr.mxu0 0.0
    %1044 = vmatpush1.msra.mxu0 0.0
    %1045 = vmatprep.subr.mxu0 0.0
    %1046 = vmatpush1.msra.mxu0 0.0
    %1047 = vmatprep.subr.mxu0 0.0
    %1048 = vmatpush1.msra.mxu0 0.0
    %1049 = vmatprep.subr.mxu0 0.0
    %1050 = vmatpush1.msra.mxu0 0.0
    %1051 = vmatprep.subr.mxu0 0.0
    %1052 = vmatpush1.msra.mxu0 0.0
    %1053 = vmatprep.subr.mxu0 0.0
    %1054 = vmatpush1.msra.mxu0 0.0
    %1055 = vmatprep.subr.mxu0 0.0
    %1056 = vmatpush1.msra.mxu0 0.0
    %1057 = vmatprep.subr.mxu0 0.0
    %1058 = vmatpush1.msra.mxu0 0.0
    %1059 = vmatprep.subr.mxu0 0.0
    %1060 = vmatpush1.msra.mxu0 0.0
    %1061 = vmatprep.subr.mxu0 0.0
    %1062 = vmatpush1.msra.mxu0 0.0
    %1063 = vmatprep.subr.mxu0 0.0
    %1064 = vmatpush1.msra.mxu0 0.0
    %1065 = vmatprep.subr.mxu0 0.0
    %1066 = vmatpush1.msra.mxu0 0.0
    %1067 = vmatprep.subr.mxu0 0.0
    %1068 = vmatpush1.msra.mxu0 0.0
    %1069 = vmatprep.subr.mxu0 0.0
    %1070 = vmatpush1.msra.mxu0 0.0
    %1071 = vmatprep.subr.mxu0 0.0
    %1072 = vmatpush1.msra.mxu0 0.0
    %1073 = vmatprep.subr.mxu0 0.0
    %1074 = vmatpush1.msra.mxu0 0.0
    %1075 = vmatprep.subr.mxu0 0.0
    %1076 = vmatpush1.msra.mxu0 0.0
    %1077 = vmatprep.subr.mxu0 0.0
    %1078 = vmatpush1.msra.mxu0 0.0
    %1079 = vmatprep.subr.mxu0 0.0
    %1080 = vmatpush1.msra.mxu0 0.0
    %1081 = vmatprep.subr.mxu0 0.0
    %1082 = vmatpush1.msra.mxu0 0.0
    %1083 = vmatprep.subr.mxu0 0.0
    %1084 = vmatpush1.msra.mxu0 0.0
    %1085 = vmatprep.subr.mxu0 0.0
    %1086 = vmatpush1.msra.mxu0 0.0
    %1087 = vmatprep.subr.mxu0 0.0
    %1088 = vmatpush1.msra.mxu0 0.0
    %1089 = vmatprep.subr.mxu0 0.0
    %1090 = vmatpush1.msra.mxu0 0.0
    %1091 = vmatprep.subr.mxu0 0.0
    %1092 = vmatpush1.msra.mxu0 0.0
    %1093 = vmatprep.subr.mxu0 0.0
    %1094 = vmatpush1.msra.mxu0 0.0
    %1095 = vmatprep.subr.mxu0 0.0
    %1096 = vmatpush1.msra.mxu0 0.0
    %1097 = vmatprep.subr.mxu0 0.0
    %1098 = vmatpush1.msra.mxu0 0.0
    %1099 = vmatprep.mubr.f32.mxu0 0.0
    %1100 = vmatmul.mubr.f32.gmra.mrb[0].mxu0 %v1033
    %v1101 = vpop.f32.mrb[0].mxu0
    %v1102 = vadd.f32 0.0, %v1101
    %v1103 = vpop.f32.mrb[0].mxu0
    %1104 = vdwg.mxu0
    %1105 = vrot.lane.b32.xlu0 %v208, 64
    %v1106 = vpop.permute.xlu0 %1105
    %v1109 = vsel %vm222, %v947, 0
    %1111 = vmatprep.subr.mxu0 0.0
    %1112 = vmatpush1.msra.mxu0 %v1106
    %1113 = vmatprep.subr.mxu0 0.0
    %1114 = vmatpush1.msra.mxu0 0.0
    %1115 = vmatprep.subr.mxu0 0.0
    %1116 = vmatpush1.msra.mxu0 0.0
    %1117 = vmatprep.subr.mxu0 0.0
    %1118 = vmatpush1.msra.mxu0 0.0
    %1119 = vmatprep.subr.mxu0 0.0
    %1120 = vmatpush1.msra.mxu0 0.0
    %1121 = vmatprep.subr.mxu0 0.0
    %1122 = vmatpush1.msra.mxu0 0.0
    %1123 = vmatprep.subr.mxu0 0.0
    %1124 = vmatpush1.msra.mxu0 0.0
    %1125 = vmatprep.subr.mxu0 0.0
    %1126 = vmatpush1.msra.mxu0 0.0
    %1127 = vmatprep.subr.mxu0 0.0
    %1128 = vmatpush1.msra.mxu0 0.0
    %1129 = vmatprep.subr.mxu0 0.0
    %1130 = vmatpush1.msra.mxu0 0.0
    %1131 = vmatprep.subr.mxu0 0.0
    %1132 = vmatpush1.msra.mxu0 0.0
    %1133 = vmatprep.subr.mxu0 0.0
    %1134 = vmatpush1.msra.mxu0 0.0
    %1135 = vmatprep.subr.mxu0 0.0
    %1136 = vmatpush1.msra.mxu0 0.0
    %1137 = vmatprep.subr.mxu0 0.0
    %1138 = vmatpush1.msra.mxu0 0.0
    %1139 = vmatprep.subr.mxu0 0.0
    %1140 = vmatpush1.msra.mxu0 0.0
    %1141 = vmatprep.subr.mxu0 0.0
    %1142 = vmatpush1.msra.mxu0 0.0
    %1143 = vmatprep.subr.mxu0 0.0
    %1144 = vmatpush1.msra.mxu0 0.0
    %1145 = vmatprep.subr.mxu0 0.0
    %1146 = vmatpush1.msra.mxu0 0.0
    %1147 = vmatprep.subr.mxu0 0.0
    %1148 = vmatpush1.msra.mxu0 0.0
    %1149 = vmatprep.subr.mxu0 0.0
    %1150 = vmatpush1.msra.mxu0 0.0
    %1151 = vmatprep.subr.mxu0 0.0
    %1152 = vmatpush1.msra.mxu0 0.0
    %1153 = vmatprep.subr.mxu0 0.0
    %1154 = vmatpush1.msra.mxu0 0.0
    %1155 = vmatprep.subr.mxu0 0.0
    %1156 = vmatpush1.msra.mxu0 0.0
    %1157 = vmatprep.subr.mxu0 0.0
    %1158 = vmatpush1.msra.mxu0 0.0
    %1159 = vmatprep.subr.mxu0 0.0
    %1160 = vmatpush1.msra.mxu0 0.0
    %1161 = vmatprep.subr.mxu0 0.0
    %1162 = vmatpush1.msra.mxu0 0.0
    %1163 = vmatprep.subr.mxu0 0.0
    %1164 = vmatpush1.msra.mxu0 0.0
    %1165 = vmatprep.subr.mxu0 0.0
    %1166 = vmatpush1.msra.mxu0 0.0
    %1167 = vmatprep.subr.mxu0 0.0
    %1168 = vmatpush1.msra.mxu0 0.0
    %1169 = vmatprep.subr.mxu0 0.0
    %1170 = vmatpush1.msra.mxu0 0.0
    %1171 = vmatprep.subr.mxu0 0.0
    %1172 = vmatpush1.msra.mxu0 0.0
    %1173 = vmatprep.subr.mxu0 0.0
    %1174 = vmatpush1.msra.mxu0 0.0
    %1175 = vmatprep.mubr.f32.mxu0 0.0
    %1176 = vmatmul.mubr.f32.gmra.mrb[0].mxu0 %v1109
    %v1177 = vpop.f32.mrb[0].mxu0
    %v1178 = vadd.f32 0.0, %v1177
    %v1179 = vpop.f32.mrb[0].mxu0
    %1180 = vdwg.mxu0
    %1181 = vrot.lane.b32.xlu0 %v210, 64
    %v1182 = vpop.permute.xlu0 %1181
    %v1185 = vsel %vm222, %v948, 0
    %1187 = vmatprep.subr.mxu0 0.0
    %1188 = vmatpush1.msra.mxu0 %v1182
    %1189 = vmatprep.subr.mxu0 0.0
    %1190 = vmatpush1.msra.mxu0 0.0
    %1191 = vmatprep.subr.mxu0 0.0
    %1192 = vmatpush1.msra.mxu0 0.0
    %1193 = vmatprep.subr.mxu0 0.0
    %1194 = vmatpush1.msra.mxu0 0.0
    %1195 = vmatprep.subr.mxu0 0.0
    %1196 = vmatpush1.msra.mxu0 0.0
    %1197 = vmatprep.subr.mxu0 0.0
    %1198 = vmatpush1.msra.mxu0 0.0
    %1199 = vmatprep.subr.mxu0 0.0
    %1200 = vmatpush1.msra.mxu0 0.0
    %1201 = vmatprep.subr.mxu0 0.0
    %1202 = vmatpush1.msra.mxu0 0.0
    %1203 = vmatprep.subr.mxu0 0.0
    %1204 = vmatpush1.msra.mxu0 0.0
    %1205 = vmatprep.subr.mxu0 0.0
    %1206 = vmatpush1.msra.mxu0 0.0
    %1207 = vmatprep.subr.mxu0 0.0
    %1208 = vmatpush1.msra.mxu0 0.0
    %1209 = vmatprep.subr.mxu0 0.0
    %1210 = vmatpush1.msra.mxu0 0.0
    %1211 = vmatprep.subr.mxu0 0.0
    %1212 = vmatpush1.msra.mxu0 0.0
    %1213 = vmatprep.subr.mxu0 0.0
    %1214 = vmatpush1.msra.mxu0 0.0
    %1215 = vmatprep.subr.mxu0 0.0
    %1216 = vmatpush1.msra.mxu0 0.0
    %1217 = vmatprep.subr.mxu0 0.0
    %1218 = vmatpush1.msra.mxu0 0.0
    %1219 = vmatprep.subr.mxu0 0.0
    %1220 = vmatpush1.msra.mxu0 0.0
    %1221 = vmatprep.subr.mxu0 0.0
    %1222 = vmatpush1.msra.mxu0 0.0
    %1223 = vmatprep.subr.mxu0 0.0
    %1224 = vmatpush1.msra.mxu0 0.0
    %1225 = vmatprep.subr.mxu0 0.0
    %1226 = vmatpush1.msra.mxu0 0.0
    %1227 = vmatprep.subr.mxu0 0.0
    %1228 = vmatpush1.msra.mxu0 0.0
    %1229 = vmatprep.subr.mxu0 0.0
    %1230 = vmatpush1.msra.mxu0 0.0
    %1231 = vmatprep.subr.mxu0 0.0
    %1232 = vmatpush1.msra.mxu0 0.0
    %1233 = vmatprep.subr.mxu0 0.0
    %1234 = vmatpush1.msra.mxu0 0.0
    %1235 = vmatprep.subr.mxu0 0.0
    %1236 = vmatpush1.msra.mxu0 0.0
    %1237 = vmatprep.subr.mxu0 0.0
    %1238 = vmatpush1.msra.mxu0 0.0
    %1239 = vmatprep.subr.mxu0 0.0
    %1240 = vmatpush1.msra.mxu0 0.0
    %1241 = vmatprep.subr.mxu0 0.0
    %1242 = vmatpush1.msra.mxu0 0.0
    %1243 = vmatprep.subr.mxu0 0.0
    %1244 = vmatpush1.msra.mxu0 0.0
    %1245 = vmatprep.subr.mxu0 0.0
    %1246 = vmatpush1.msra.mxu0 0.0
    %1247 = vmatprep.subr.mxu0 0.0
    %1248 = vmatpush1.msra.mxu0 0.0
    %1249 = vmatprep.subr.mxu0 0.0
    %1250 = vmatpush1.msra.mxu0 0.0
    %1251 = vmatprep.mubr.f32.mxu0 0.0
    %1252 = vmatmul.mubr.f32.gmra.mrb[0].mxu0 %v1185
    %v1253 = vpop.f32.mrb[0].mxu0
    %v1254 = vadd.f32 0.0, %v1253
    %v1255 = vpop.f32.mrb[0].mxu0
    %1256 = vdwg.mxu0
    %1257 = vrot.lane.b32.xlu0 %v201, 64
    %v1258 = vpop.permute.xlu0 %1257
    %v1261 = vsel %vm222, %v949, 0
    %1263 = vmatprep.subr.mxu0 0.0
    %1264 = vmatpush1.msra.mxu0 %v1258
    %1265 = vmatprep.subr.mxu0 0.0
    %1266 = vmatpush1.msra.mxu0 0.0
    %1267 = vmatprep.subr.mxu0 0.0
    %1268 = vmatpush1.msra.mxu0 0.0
    %1269 = vmatprep.subr.mxu0 0.0
    %1270 = vmatpush1.msra.mxu0 0.0
    %1271 = vmatprep.subr.mxu0 0.0
    %1272 = vmatpush1.msra.mxu0 0.0
    %1273 = vmatprep.subr.mxu0 0.0
    %1274 = vmatpush1.msra.mxu0 0.0
    %1275 = vmatprep.subr.mxu0 0.0
    %1276 = vmatpush1.msra.mxu0 0.0
    %1277 = vmatprep.subr.mxu0 0.0
    %1278 = vmatpush1.msra.mxu0 0.0
    %1279 = vmatprep.subr.mxu0 0.0
    %1280 = vmatpush1.msra.mxu0 0.0
    %1281 = vmatprep.subr.mxu0 0.0
    %1282 = vmatpush1.msra.mxu0 0.0
    %1283 = vmatprep.subr.mxu0 0.0
    %1284 = vmatpush1.msra.mxu0 0.0
    %1285 = vmatprep.subr.mxu0 0.0
    %1286 = vmatpush1.msra.mxu0 0.0
    %1287 = vmatprep.subr.mxu0 0.0
    %1288 = vmatpush1.msra.mxu0 0.0
    %1289 = vmatprep.subr.mxu0 0.0
    %1290 = vmatpush1.msra.mxu0 0.0
    %1291 = vmatprep.subr.mxu0 0.0
    %1292 = vmatpush1.msra.mxu0 0.0
    %1293 = vmatprep.subr.mxu0 0.0
    %1294 = vmatpush1.msra.mxu0 0.0
    %1295 = vmatprep.subr.mxu0 0.0
    %1296 = vmatpush1.msra.mxu0 0.0
    %1297 = vmatprep.subr.mxu0 0.0
    %1298 = vmatpush1.msra.mxu0 0.0
    %1299 = vmatprep.subr.mxu0 0.0
    %1300 = vmatpush1.msra.mxu0 0.0
    %1301 = vmatprep.subr.mxu0 0.0
    %1302 = vmatpush1.msra.mxu0 0.0
    %1303 = vmatprep.subr.mxu0 0.0
    %1304 = vmatpush1.msra.mxu0 0.0
    %1305 = vmatprep.subr.mxu0 0.0
    %1306 = vmatpush1.msra.mxu0 0.0
    %1307 = vmatprep.subr.mxu0 0.0
    %1308 = vmatpush1.msra.mxu0 0.0
    %1309 = vmatprep.subr.mxu0 0.0
    %1310 = vmatpush1.msra.mxu0 0.0
    %1311 = vmatprep.subr.mxu0 0.0
    %1312 = vmatpush1.msra.mxu0 0.0
    %1313 = vmatprep.subr.mxu0 0.0
    %1314 = vmatpush1.msra.mxu0 0.0
    %1315 = vmatprep.subr.mxu0 0.0
    %1316 = vmatpush1.msra.mxu0 0.0
    %1317 = vmatprep.subr.mxu0 0.0
    %1318 = vmatpush1.msra.mxu0 0.0
    %1319 = vmatprep.subr.mxu0 0.0
    %1320 = vmatpush1.msra.mxu0 0.0
    %1321 = vmatprep.subr.mxu0 0.0
    %1322 = vmatpush1.msra.mxu0 0.0
    %1323 = vmatprep.subr.mxu0 0.0
    %1324 = vmatpush1.msra.mxu0 0.0
    %1325 = vmatprep.subr.mxu0 0.0
    %1326 = vmatpush1.msra.mxu0 0.0
    %1327 = vmatprep.mubr.f32.mxu0 0.0
    %1328 = vmatmul.mubr.f32.gmra.mrb[0].mxu0 %v1261
    %v1329 = vpop.f32.mrb[0].mxu0
    %v1330 = vadd.f32 0.0, %v1329
    %v1331 = vpop.f32.mrb[0].mxu0
    %1332 = vdwg.mxu0
    %1333 = vrot.lane.b32.xlu0 %v213, 64
    %v1334 = vpop.permute.xlu0 %1333
    %v1337 = vsel %vm222, %v950, 0
    %1339 = vmatprep.subr.mxu0 0.0
    %1340 = vmatpush1.msra.mxu0 %v1334
    %1341 = vmatprep.subr.mxu0 0.0
    %1342 = vmatpush1.msra.mxu0 0.0
    %1343 = vmatprep.subr.mxu0 0.0
    %1344 = vmatpush1.msra.mxu0 0.0
    %1345 = vmatprep.subr.mxu0 0.0
    %1346 = vmatpush1.msra.mxu0 0.0
    %1347 = vmatprep.subr.mxu0 0.0
    %1348 = vmatpush1.msra.mxu0 0.0
    %1349 = vmatprep.subr.mxu0 0.0
    %1350 = vmatpush1.msra.mxu0 0.0
    %1351 = vmatprep.subr.mxu0 0.0
    %1352 = vmatpush1.msra.mxu0 0.0
    %1353 = vmatprep.subr.mxu0 0.0
    %1354 = vmatpush1.msra.mxu0 0.0
    %1355 = vmatprep.subr.mxu0 0.0
    %1356 = vmatpush1.msra.mxu0 0.0
    %1357 = vmatprep.subr.mxu0 0.0
    %1358 = vmatpush1.msra.mxu0 0.0
    %1359 = vmatprep.subr.mxu0 0.0
    %1360 = vmatpush1.msra.mxu0 0.0
    %1361 = vmatprep.subr.mxu0 0.0
    %1362 = vmatpush1.msra.mxu0 0.0
    %1363 = vmatprep.subr.mxu0 0.0
    %1364 = vmatpush1.msra.mxu0 0.0
    %1365 = vmatprep.subr.mxu0 0.0
    %1366 = vmatpush1.msra.mxu0 0.0
    %1367 = vmatprep.subr.mxu0 0.0
    %1368 = vmatpush1.msra.mxu0 0.0
    %1369 = vmatprep.subr.mxu0 0.0
    %1370 = vmatpush1.msra.mxu0 0.0
    %1371 = vmatprep.subr.mxu0 0.0
    %1372 = vmatpush1.msra.mxu0 0.0
    %1373 = vmatprep.subr.mxu0 0.0
    %1374 = vmatpush1.msra.mxu0 0.0
    %1375 = vmatprep.subr.mxu0 0.0
    %1376 = vmatpush1.msra.mxu0 0.0
    %1377 = vmatprep.subr.mxu0 0.0
    %1378 = vmatpush1.msra.mxu0 0.0
    %1379 = vmatprep.subr.mxu0 0.0
    %1380 = vmatpush1.msra.mxu0 0.0
    %1381 = vmatprep.subr.mxu0 0.0
    %1382 = vmatpush1.msra.mxu0 0.0
    %1383 = vmatprep.subr.mxu0 0.0
    %1384 = vmatpush1.msra.mxu0 0.0
    %1385 = vmatprep.subr.mxu0 0.0
    %1386 = vmatpush1.msra.mxu0 0.0
    %1387 = vmatprep.subr.mxu0 0.0
    %1388 = vmatpush1.msra.mxu0 0.0
    %1389 = vmatprep.subr.mxu0 0.0
    %1390 = vmatpush1.msra.mxu0 0.0
    %1391 = vmatprep.subr.mxu0 0.0
    %1392 = vmatpush1.msra.mxu0 0.0
    %1393 = vmatprep.subr.mxu0 0.0
    %1394 = vmatpush1.msra.mxu0 0.0
    %1395 = vmatprep.subr.mxu0 0.0
    %1396 = vmatpush1.msra.mxu0 0.0
    %1397 = vmatprep.subr.mxu0 0.0
    %1398 = vmatpush1.msra.mxu0 0.0
    %1399 = vmatprep.subr.mxu0 0.0
    %1400 = vmatpush1.msra.mxu0 0.0
    %1401 = vmatprep.subr.mxu0 0.0
    %1402 = vmatpush1.msra.mxu0 0.0
    %1403 = vmatprep.mubr.f32.mxu0 0.0
    %1404 = vmatmul.mubr.f32.gmra.mrb[0].mxu0 %v1337
    %v1405 = vpop.f32.mrb[0].mxu0
    %v1406 = vadd.f32 0.0, %v1405
    %v1407 = vpop.f32.mrb[0].mxu0
    %1408 = vdwg.mxu0
    %1409 = vrot.lane.b32.xlu0 %v215, 64
    %v1410 = vpop.permute.xlu0 %1409
    %v1413 = vsel %vm222, %v951, 0
    %1415 = vmatprep.subr.mxu0 0.0
    %1416 = vmatpush1.msra.mxu0 %v1410
    %1417 = vmatprep.subr.mxu0 0.0
    %1418 = vmatpush1.msra.mxu0 0.0
    %1419 = vmatprep.subr.mxu0 0.0
    %1420 = vmatpush1.msra.mxu0 0.0
    %1421 = vmatprep.subr.mxu0 0.0
    %1422 = vmatpush1.msra.mxu0 0.0
    %1423 = vmatprep.subr.mxu0 0.0
    %1424 = vmatpush1.msra.mxu0 0.0
    %1425 = vmatprep.subr.mxu0 0.0
    %1426 = vmatpush1.msra.mxu0 0.0
    %1427 = vmatprep.subr.mxu0 0.0
    %1428 = vmatpush1.msra.mxu0 0.0
    %1429 = vmatprep.subr.mxu0 0.0
    %1430 = vmatpush1.msra.mxu0 0.0
    %1431 = vmatprep.subr.mxu0 0.0
    %1432 = vmatpush1.msra.mxu0 0.0
    %1433 = vmatprep.subr.mxu0 0.0
    %1434 = vmatpush1.msra.mxu0 0.0
    %1435 = vmatprep.subr.mxu0 0.0
    %1436 = vmatpush1.msra.mxu0 0.0
    %1437 = vmatprep.subr.mxu0 0.0
    %1438 = vmatpush1.msra.mxu0 0.0
    %1439 = vmatprep.subr.mxu0 0.0
    %1440 = vmatpush1.msra.mxu0 0.0
    %1441 = vmatprep.subr.mxu0 0.0
    %1442 = vmatpush1.msra.mxu0 0.0
    %1443 = vmatprep.subr.mxu0 0.0
    %1444 = vmatpush1.msra.mxu0 0.0
    %1445 = vmatprep.subr.mxu0 0.0
    %1446 = vmatpush1.msra.mxu0 0.0
    %1447 = vmatprep.subr.mxu0 0.0
    %1448 = vmatpush1.msra.mxu0 0.0
    %1449 = vmatprep.subr.mxu0 0.0
    %1450 = vmatpush1.msra.mxu0 0.0
    %1451 = vmatprep.subr.mxu0 0.0
    %1452 = vmatpush1.msra.mxu0 0.0
    %1453 = vmatprep.subr.mxu0 0.0
    %1454 = vmatpush1.msra.mxu0 0.0
    %1455 = vmatprep.subr.mxu0 0.0
    %1456 = vmatpush1.msra.mxu0 0.0
    %1457 = vmatprep.subr.mxu0 0.0
    %1458 = vmatpush1.msra.mxu0 0.0
    %1459 = vmatprep.subr.mxu0 0.0
    %1460 = vmatpush1.msra.mxu0 0.0
    %1461 = vmatprep.subr.mxu0 0.0
    %1462 = vmatpush1.msra.mxu0 0.0
    %1463 = vmatprep.subr.mxu0 0.0
    %1464 = vmatpush1.msra.mxu0 0.0
    %1465 = vmatprep.subr.mxu0 0.0
    %1466 = vmatpush1.msra.mxu0 0.0
    %1467 = vmatprep.subr.mxu0 0.0
    %1468 = vmatpush1.msra.mxu0 0.0
    %1469 = vmatprep.subr.mxu0 0.0
    %1470 = vmatpush1.msra.mxu0 0.0
    %1471 = vmatprep.subr.mxu0 0.0
    %1472 = vmatpush1.msra.mxu0 0.0
    %1473 = vmatprep.subr.mxu0 0.0
    %1474 = vmatpush1.msra.mxu0 0.0
    %1475 = vmatprep.subr.mxu0 0.0
    %1476 = vmatpush1.msra.mxu0 0.0
    %1477 = vmatprep.subr.mxu0 0.0
    %1478 = vmatpush1.msra.mxu0 0.0
    %1479 = vmatprep.mubr.f32.mxu0 0.0
    %1480 = vmatmul.mubr.f32.gmra.mrb[0].mxu0 %v1413
    %v1481 = vpop.f32.mrb[0].mxu0
    %v1482 = vadd.f32 0.0, %v1481
    %v1483 = vpop.f32.mrb[0].mxu0
    %1484 = vdwg.mxu0
    %1485 = vrot.lane.b32.xlu0 %v217, 64
    %v1486 = vpop.permute.xlu0 %1485
    %v1489 = vsel %vm222, %v952, 0
    %1491 = vmatprep.subr.mxu0 0.0
    %1492 = vmatpush1.msra.mxu0 %v1486
    %1493 = vmatprep.subr.mxu0 0.0
    %1494 = vmatpush1.msra.mxu0 0.0
    %1495 = vmatprep.subr.mxu0 0.0
    %1496 = vmatpush1.msra.mxu0 0.0
    %1497 = vmatprep.subr.mxu0 0.0
    %1498 = vmatpush1.msra.mxu0 0.0
    %1499 = vmatprep.subr.mxu0 0.0
    %1500 = vmatpush1.msra.mxu0 0.0
    %1501 = vmatprep.subr.mxu0 0.0
    %1502 = vmatpush1.msra.mxu0 0.0
    %1503 = vmatprep.subr.mxu0 0.0
    %1504 = vmatpush1.msra.mxu0 0.0
    %1505 = vmatprep.subr.mxu0 0.0
    %1506 = vmatpush1.msra.mxu0 0.0
    %1507 = vmatprep.subr.mxu0 0.0
    %1508 = vmatpush1.msra.mxu0 0.0
    %1509 = vmatprep.subr.mxu0 0.0
    %1510 = vmatpush1.msra.mxu0 0.0
    %1511 = vmatprep.subr.mxu0 0.0
    %1512 = vmatpush1.msra.mxu0 0.0
    %1513 = vmatprep.subr.mxu0 0.0
    %1514 = vmatpush1.msra.mxu0 0.0
    %1515 = vmatprep.subr.mxu0 0.0
    %1516 = vmatpush1.msra.mxu0 0.0
    %1517 = vmatprep.subr.mxu0 0.0
    %1518 = vmatpush1.msra.mxu0 0.0
    %1519 = vmatprep.subr.mxu0 0.0
    %1520 = vmatpush1.msra.mxu0 0.0
    %1521 = vmatprep.subr.mxu0 0.0
    %1522 = vmatpush1.msra.mxu0 0.0
    %1523 = vmatprep.subr.mxu0 0.0
    %1524 = vmatpush1.msra.mxu0 0.0
    %1525 = vmatprep.subr.mxu0 0.0
    %1526 = vmatpush1.msra.mxu0 0.0
    %1527 = vmatprep.subr.mxu0 0.0
    %1528 = vmatpush1.msra.mxu0 0.0
    %1529 = vmatprep.subr.mxu0 0.0
    %1530 = vmatpush1.msra.mxu0 0.0
    %1531 = vmatprep.subr.mxu0 0.0
    %1532 = vmatpush1.msra.mxu0 0.0
    %1533 = vmatprep.subr.mxu0 0.0
    %1534 = vmatpush1.msra.mxu0 0.0
    %1535 = vmatprep.subr.mxu0 0.0
    %1536 = vmatpush1.msra.mxu0 0.0
    %1537 = vmatprep.subr.mxu0 0.0
    %1538 = vmatpush1.msra.mxu0 0.0
    %1539 = vmatprep.subr.mxu0 0.0
    %1540 = vmatpush1.msra.mxu0 0.0
    %1541 = vmatprep.subr.mxu0 0.0
    %1542 = vmatpush1.msra.mxu0 0.0
    %1543 = vmatprep.subr.mxu0 0.0
    %1544 = vmatpush1.msra.mxu0 0.0
    %1545 = vmatprep.subr.mxu0 0.0
    %1546 = vmatpush1.msra.mxu0 0.0
    %1547 = vmatprep.subr.mxu0 0.0
    %1548 = vmatpush1.msra.mxu0 0.0
    %1549 = vmatprep.subr.mxu0 0.0
    %1550 = vmatpush1.msra.mxu0 0.0
    %1551 = vmatprep.subr.mxu0 0.0
    %1552 = vmatpush1.msra.mxu0 0.0
    %1553 = vmatprep.subr.mxu0 0.0
    %1554 = vmatpush1.msra.mxu0 0.0
    %1555 = vmatprep.mubr.f32.mxu0 0.0
    %1556 = vmatmul.mubr.f32.gmra.mrb[0].mxu0 %v1489
    %v1557 = vpop.f32.mrb[0].mxu0
    %v1558 = vadd.f32 0.0, %v1557
    %v1559 = vpop.f32.mrb[0].mxu0
    %1560 = vdwg.mxu0
    %1562 = vrot.lane.b32.xlu0 %v1102, 8
    %v1563 = vpop.permute.xlu0 %1562
    %1566 = vrot.lane.b32.xlu0 %v1178, 16
    %v1567 = vpop.permute.xlu0 %1566
    %1570 = vrot.lane.b32.xlu0 %v1254, 24
    %v1571 = vpop.permute.xlu0 %1570
    %v1573 = vsel %vm222, %v1026, %v1563
    %vm1574 = vcmask 130048
    %v1575 = vsel %vm1574, %v1573, %v1567
    %vm1576 = vcmask 195584
    %v1577 = vsel %vm1576, %v1575, %v1571
    %1579 = vrot.lane.b32.xlu0 %v1406, 8
    %v1580 = vpop.permute.xlu0 %1579
    %1583 = vrot.lane.b32.xlu0 %v1482, 16
    %v1584 = vpop.permute.xlu0 %1583
    %1587 = vrot.lane.b32.xlu0 %v1558, 24
    %v1588 = vpop.permute.xlu0 %1587
    %v1590 = vsel %vm222, %v1330, %v1580
    %v1591 = vsel %vm1574, %v1590, %v1584
    %v1592 = vsel %vm1576, %v1591, %v1588
    %v1593 = vld [vmem:[%s8] sm:$0xff]
    %v1594 = vld [vmem:[%s8 + $0x8] sm:$0xff]
    %v1595 = vld [vmem:[%s8 + $0x10] sm:$0xff]
    %v1596 = vld [vmem:[%s8 + $0x18] sm:$0xff]
    %v1597 = vld [vmem:[%s9] sm:$0x1]
    %v1599 = vlaneseq
    %v1600 = vshrl.u32 %v1599, 7
    %v1601 = vsub.s32 0, %v1600
    %v1602 = vrot.slane %v1597, %v1601
    %v1605 = vsel %vm68, %v1577, 0
    %v1608 = vsel %vm68, %v1592, 0
    %1610 = vmatprep.subr.mxu0 0.0
    %1611 = vmatpush1.msra.mxu0 %v1593
    %1612 = vmatprep.subr.mxu0 0.0
    %1613 = vmatpush1.msra.mxu0 %v1594
    %1614 = vmatprep.subr.mxu0 0.0
    %1615 = vmatpush1.msra.mxu0 %v1595
    %1616 = vmatprep.subr.mxu0 0.0
    %1617 = vmatpush1.msra.mxu0 %v1596
    %1618 = vmatprep.subr.mxu0 0.0
    %1619 = vmatpush1.msra.mxu0 0.0
    %1620 = vmatprep.subr.mxu0 0.0
    %1621 = vmatpush1.msra.mxu0 0.0
    %1622 = vmatprep.subr.mxu0 0.0
    %1623 = vmatpush1.msra.mxu0 0.0
    %1624 = vmatprep.subr.mxu0 0.0
    %1625 = vmatpush1.msra.mxu0 0.0
    %1626 = vmatprep.subr.mxu0 0.0
    %1627 = vmatpush1.msra.mxu0 0.0
    %1628 = vmatprep.subr.mxu0 0.0
    %1629 = vmatpush1.msra.mxu0 0.0
    %1630 = vmatprep.subr.mxu0 0.0
    %1631 = vmatpush1.msra.mxu0 0.0
    %1632 = vmatprep.subr.mxu0 0.0
    %1633 = vmatpush1.msra.mxu0 0.0
    %1634 = vmatprep.subr.mxu0 0.0
    %1635 = vmatpush1.msra.mxu0 0.0
    %1636 = vmatprep.subr.mxu0 0.0
    %1637 = vmatpush1.msra.mxu0 0.0
    %1638 = vmatprep.subr.mxu0 0.0
    %1639 = vmatpush1.msra.mxu0 0.0
    %1640 = vmatprep.subr.mxu0 0.0
    %1641 = vmatpush1.msra.mxu0 0.0
    %1642 = vmatprep.subr.mxu0 0.0
    %1643 = vmatpush1.msra.mxu0 0.0
    %1644 = vmatprep.subr.mxu0 0.0
    %1645 = vmatpush1.msra.mxu0 0.0
    %1646 = vmatprep.subr.mxu0 0.0
    %1647 = vmatpush1.msra.mxu0 0.0
    %1648 = vmatprep.subr.mxu0 0.0
    %1649 = vmatpush1.msra.mxu0 0.0
    %1650 = vmatprep.subr.mxu0 0.0
    %1651 = vmatpush1.msra.mxu0 0.0
    %1652 = vmatprep.subr.mxu0 0.0
    %1653 = vmatpush1.msra.mxu0 0.0
    %1654 = vmatprep.subr.mxu0 0.0
    %1655 = vmatpush1.msra.mxu0 0.0
    %1656 = vmatprep.subr.mxu0 0.0
    %1657 = vmatpush1.msra.mxu0 0.0
    %1658 = vmatprep.subr.mxu0 0.0
    %1659 = vmatpush1.msra.mxu0 0.0
    %1660 = vmatprep.subr.mxu0 0.0
    %1661 = vmatpush1.msra.mxu0 0.0
    %1662 = vmatprep.subr.mxu0 0.0
    %1663 = vmatpush1.msra.mxu0 0.0
    %1664 = vmatprep.subr.mxu0 0.0
    %1665 = vmatpush1.msra.mxu0 0.0
    %1666 = vmatprep.subr.mxu0 0.0
    %1667 = vmatpush1.msra.mxu0 0.0
    %1668 = vmatprep.subr.mxu0 0.0
    %1669 = vmatpush1.msra.mxu0 0.0
    %1670 = vmatprep.subr.mxu0 0.0
    %1671 = vmatpush1.msra.mxu0 0.0
    %1672 = vmatprep.subr.mxu0 0.0
    %1673 = vmatpush1.msra.mxu0 0.0
    %1674 = vmatprep.mubr.f32.mxu0 0.0
    %1675 = vmatmul.mubr.f32.gmra.mrb[0].mxu0 %v1605
    %v1676 = vpop.f32.mrb[0].mxu0
    %v1677 = vadd.f32 %v1602, %v1676
    %v1678 = vpop.f32.mrb[0].mxu0
    %1679 = vmatprep.mubr.f32.mxu0 0.0
    %1680 = vmatmul.mubr.f32.gmra.mrb[0].mxu0 %v1608
    %v1681 = vpop.f32.mrb[0].mxu0
    %v1682 = vadd.f32 %v1602, %v1681
    %v1683 = vpop.f32.mrb[0].mxu0
    %1684 = vdwg.mxu0
    %v1685 = vadd.f32 %v62, %v1677
    %v1686 = vadd.f32 %v63, %v1682
    %v1687 = vld [vmem:[%s4] sm:$0x1]
    %v1688 = vld [vmem:[%s5] sm:$0x1]
    %v1689 = vsel %vm68, %v1685, 0.0
    %1690 = vadd.xlane.f32.xlu0 %v1689
    %v1691 = vpop.xlane.xlu0 %1690
    %v1692 = vsel %vm68, %v1686, 0.0
    %1693 = vadd.xlane.f32.xlu0 %v1692
    %v1694 = vpop.xlane.xlu0 %1693
    %v1695 = vmul.f32 %v1691, %v75
    %v1696 = vmul.f32 %v1694, %v75
    %v1697 = vsub.f32 %v1685, %v1695
    %v1698 = vsub.f32 %v1686, %v1696
    %v1699 = vmul.f32 %v1697, %v1697
    %v1700 = vmul.f32 %v1698, %v1698
    %v1701 = vsel %vm68, %v1699, 0.0
    %1702 = vadd.xlane.f32.xlu0 %v1701
    %v1703 = vpop.xlane.xlu0 %1702
    %v1704 = vsel %vm68, %v1700, 0.0
    %1705 = vadd.xlane.f32.xlu0 %v1704
    %v1706 = vpop.xlane.xlu0 %1705
    %v1707 = vmul.f32 %v1703, %v75
    %v1708 = vmul.f32 %v1706, %v75
    %v1709 = vadd.f32 %v1707, 1e-12
    %v1710 = vadd.f32 %v1708, 1e-12
    %v1711 = vrsqrt.pop %v1709
    %v1712 = vrsqrt.pop %v1710
    %v1713 = vmul.f32 %v1697, %v1711
    %v1714 = vmul.f32 %v1698, %v1712
    %v1716 = vlaneseq
    %v1717 = vshrl.u32 %v1716, 7
    %v1718 = vsub.s32 0, %v1717
    %v1719 = vrot.slane %v1687, %v1718
    %v1721 = vmul.f32 %v1713, %v1719
    %v1722 = vmul.f32 %v1714, %v1719
    %v1724 = vlaneseq
    %v1725 = vshrl.u32 %v1724, 7
    %v1726 = vsub.s32 0, %v1725
    %v1727 = vrot.slane %v1688, %v1726
    %v1729 = vadd.f32 %v1721, %v1727
    %v1730 = vadd.f32 %v1722, %v1727
    %v1731 = vld [vmem:[%s10] sm:$0xff]
    %v1732 = vld [vmem:[%s10 + $0x8] sm:$0xff]
    %v1733 = vld [vmem:[%s10 + $0x10] sm:$0xff]
    %v1734 = vld [vmem:[%s10 + $0x18] sm:$0xff]
    %v1735 = vld [vmem:[%s11] sm:$0x1]
    %v1737 = vlaneseq
    %v1738 = vshrl.u32 %v1737, 7
    %v1739 = vsub.s32 0, %v1738
    %v1740 = vrot.slane %v1735, %v1739
    %v1743 = vsel %vm68, %v1729, 0
    %v1746 = vsel %vm68, %v1730, 0
    %1748 = vmatprep.subr.mxu0 0.0
    %1749 = vmatpush1.msra.mxu0 %v1731
    %1750 = vmatprep.subr.mxu0 0.0
    %1751 = vmatpush1.msra.mxu0 %v1732
    %1752 = vmatprep.subr.mxu0 0.0
    %1753 = vmatpush1.msra.mxu0 %v1733
    %1754 = vmatprep.subr.mxu0 0.0
    %1755 = vmatpush1.msra.mxu0 %v1734
    %1756 = vmatprep.subr.mxu0 0.0
    %1757 = vmatpush1.msra.mxu0 0.0
    %1758 = vmatprep.subr.mxu0 0.0
    %1759 = vmatpush1.msra.mxu0 0.0
    %1760 = vmatprep.subr.mxu0 0.0
    %1761 = vmatpush1.msra.mxu0 0.0
    %1762 = vmatprep.subr.mxu0 0.0
    %1763 = vmatpush1.msra.mxu0 0.0
    %1764 = vmatprep.subr.mxu0 0.0
    %1765 = vmatpush1.msra.mxu0 0.0
    %1766 = vmatprep.subr.mxu0 0.0
    %1767 = vmatpush1.msra.mxu0 0.0
    %1768 = vmatprep.subr.mxu0 0.0
    %1769 = vmatpush1.msra.mxu0 0.0
    %1770 = vmatprep.subr.mxu0 0.0
    %1771 = vmatpush1.msra.mxu0 0.0
    %1772 = vmatprep.subr.mxu0 0.0
    %1773 = vmatpush1.msra.mxu0 0.0
    %1774 = vmatprep.subr.mxu0 0.0
    %1775 = vmatpush1.msra.mxu0 0.0
    %1776 = vmatprep.subr.mxu0 0.0
    %1777 = vmatpush1.msra.mxu0 0.0
    %1778 = vmatprep.subr.mxu0 0.0
    %1779 = vmatpush1.msra.mxu0 0.0
    %1780 = vmatprep.subr.mxu0 0.0
    %1781 = vmatpush1.msra.mxu0 0.0
    %1782 = vmatprep.subr.mxu0 0.0
    %1783 = vmatpush1.msra.mxu0 0.0
    %1784 = vmatprep.subr.mxu0 0.0
    %1785 = vmatpush1.msra.mxu0 0.0
    %1786 = vmatprep.subr.mxu0 0.0
    %1787 = vmatpush1.msra.mxu0 0.0
    %1788 = vmatprep.subr.mxu0 0.0
    %1789 = vmatpush1.msra.mxu0 0.0
    %1790 = vmatprep.subr.mxu0 0.0
    %1791 = vmatpush1.msra.mxu0 0.0
    %1792 = vmatprep.subr.mxu0 0.0
    %1793 = vmatpush1.msra.mxu0 0.0
    %1794 = vmatprep.subr.mxu0 0.0
    %1795 = vmatpush1.msra.mxu0 0.0
    %1796 = vmatprep.subr.mxu0 0.0
    %1797 = vmatpush1.msra.mxu0 0.0
    %1798 = vmatprep.subr.mxu0 0.0
    %1799 = vmatpush1.msra.mxu0 0.0
    %1800 = vmatprep.subr.mxu0 0.0
    %1801 = vmatpush1.msra.mxu0 0.0
    %1802 = vmatprep.subr.mxu0 0.0
    %1803 = vmatpush1.msra.mxu0 0.0
    %1804 = vmatprep.subr.mxu0 0.0
    %1805 = vmatpush1.msra.mxu0 0.0
    %1806 = vmatprep.subr.mxu0 0.0
    %1807 = vmatpush1.msra.mxu0 0.0
    %1808 = vmatprep.subr.mxu0 0.0
    %1809 = vmatpush1.msra.mxu0 0.0
    %1810 = vmatprep.subr.mxu0 0.0
    %1811 = vmatpush1.msra.mxu0 0.0
    %1812 = vmatprep.mubr.f32.mxu0 0.0
    %1813 = vmatmul.mubr.f32.gmra.mrb[0].mxu0 %v1743
    %v1814 = vpop.f32.mrb[0].mxu0
    %v1815 = vadd.f32 %v1740, %v1814
    %v1816 = vpop.f32.mrb[0].mxu0
    %1817 = vmatprep.mubr.f32.mxu0 0.0
    %1818 = vmatmul.mubr.f32.gmra.mrb[0].mxu0 %v1746
    %v1819 = vpop.f32.mrb[0].mxu0
    %v1820 = vadd.f32 %v1740, %v1819
    %v1821 = vpop.f32.mrb[0].mxu0
    %1822 = vdwg.mxu0
    %v1823 = vmax.f32 %v1815, 0.0
    %v1824 = vmax.f32 %v1820, 0.0
    %v1825 = vld [vmem:[%s12] sm:$0xff]
    %v1826 = vld [vmem:[%s12 + $0x8] sm:$0xff]
    %v1827 = vld [vmem:[%s12 + $0x10] sm:$0xff]
    %v1828 = vld [vmem:[%s12 + $0x18] sm:$0xff]
    %v1829 = vld [vmem:[%s12 + $0x20] sm:$0xff]
    %v1830 = vld [vmem:[%s12 + $0x28] sm:$0xff]
    %v1831 = vld [vmem:[%s12 + $0x30] sm:$0xff]
    %v1832 = vld [vmem:[%s12 + $0x38] sm:$0xff]
    %v1833 = vld [vmem:[%s13] sm:$0x1]
    %v1835 = vlaneseq
    %v1836 = vshrl.u32 %v1835, 7
    %v1837 = vsub.s32 0, %v1836
    %v1838 = vrot.slane %v1833, %v1837
    %vm1840 = vcmask 523264
    %v1842 = vsel %vm1840, %v1823, 0
    %v1845 = vsel %vm1840, %v1824, 0
    %1847 = vmatprep.subr.mxu0 0.0
    %1848 = vmatpush1.msra.mxu0 %v1825
    %1849 = vmatprep.subr.mxu0 0.0
    %1850 = vmatpush1.msra.mxu0 %v1826
    %1851 = vmatprep.subr.mxu0 0.0
    %1852 = vmatpush1.msra.mxu0 %v1827
    %1853 = vmatprep.subr.mxu0 0.0
    %1854 = vmatpush1.msra.mxu0 %v1828
    %1855 = vmatprep.subr.mxu0 0.0
    %1856 = vmatpush1.msra.mxu0 %v1829
    %1857 = vmatprep.subr.mxu0 0.0
    %1858 = vmatpush1.msra.mxu0 %v1830
    %1859 = vmatprep.subr.mxu0 0.0
    %1860 = vmatpush1.msra.mxu0 %v1831
    %1861 = vmatprep.subr.mxu0 0.0
    %1862 = vmatpush1.msra.mxu0 %v1832
    %1863 = vmatprep.subr.mxu0 0.0
    %1864 = vmatpush1.msra.mxu0 0.0
    %1865 = vmatprep.subr.mxu0 0.0
    %1866 = vmatpush1.msra.mxu0 0.0
    %1867 = vmatprep.subr.mxu0 0.0
    %1868 = vmatpush1.msra.mxu0 0.0
    %1869 = vmatprep.subr.mxu0 0.0
    %1870 = vmatpush1.msra.mxu0 0.0
    %1871 = vmatprep.subr.mxu0 0.0
    %1872 = vmatpush1.msra.mxu0 0.0
    %1873 = vmatprep.subr.mxu0 0.0
    %1874 = vmatpush1.msra.mxu0 0.0
    %1875 = vmatprep.subr.mxu0 0.0
    %1876 = vmatpush1.msra.mxu0 0.0
    %1877 = vmatprep.subr.mxu0 0.0
    %1878 = vmatpush1.msra.mxu0 0.0
    %1879 = vmatprep.subr.mxu0 0.0
    %1880 = vmatpush1.msra.mxu0 0.0
    %1881 = vmatprep.subr.mxu0 0.0
    %1882 = vmatpush1.msra.mxu0 0.0
    %1883 = vmatprep.subr.mxu0 0.0
    %1884 = vmatpush1.msra.mxu0 0.0
    %1885 = vmatprep.subr.mxu0 0.0
    %1886 = vmatpush1.msra.mxu0 0.0
    %1887 = vmatprep.subr.mxu0 0.0
    %1888 = vmatpush1.msra.mxu0 0.0
    %1889 = vmatprep.subr.mxu0 0.0
    %1890 = vmatpush1.msra.mxu0 0.0
    %1891 = vmatprep.subr.mxu0 0.0
    %1892 = vmatpush1.msra.mxu0 0.0
    %1893 = vmatprep.subr.mxu0 0.0
    %1894 = vmatpush1.msra.mxu0 0.0
    %1895 = vmatprep.subr.mxu0 0.0
    %1896 = vmatpush1.msra.mxu0 0.0
    %1897 = vmatprep.subr.mxu0 0.0
    %1898 = vmatpush1.msra.mxu0 0.0
    %1899 = vmatprep.subr.mxu0 0.0
    %1900 = vmatpush1.msra.mxu0 0.0
    %1901 = vmatprep.subr.mxu0 0.0
    %1902 = vmatpush1.msra.mxu0 0.0
    %1903 = vmatprep.subr.mxu0 0.0
    %1904 = vmatpush1.msra.mxu0 0.0
    %1905 = vmatprep.subr.mxu0 0.0
    %1906 = vmatpush1.msra.mxu0 0.0
    %1907 = vmatprep.subr.mxu0 0.0
    %1908 = vmatpush1.msra.mxu0 0.0
    %1909 = vmatprep.subr.mxu0 0.0
    %1910 = vmatpush1.msra.mxu0 0.0
    %1911 = vmatprep.mubr.f32.mxu0 0.0
    %1912 = vmatmul.mubr.f32.gmra.mrb[0].mxu0 %v1842
    %v1913 = vpop.f32.mrb[0].mxu0
    %v1914 = vadd.f32 %v1838, %v1913
    %v1915 = vpop.f32.mrb[0].mxu0
    %1916 = vmatprep.mubr.f32.mxu0 0.0
    %1917 = vmatmul.mubr.f32.gmra.mrb[0].mxu0 %v1845
    %v1918 = vpop.f32.mrb[0].mxu0
    %v1919 = vadd.f32 %v1838, %v1918
    %v1920 = vpop.f32.mrb[0].mxu0
    %1921 = vdwg.mxu0
    %v1922 = vadd.f32 %v1685, %v1914
    %v1923 = vadd.f32 %v1686, %v1919
    %v1925 = vrot.slane %v1922, 1
    %1926 = vrot.lane.b32.xlu0 %v1925, 32
    %v1927 = vpop.permute.xlu0 %1926
    %v1929 = vrot.slane %v1922, 2
    %1930 = vrot.lane.b32.xlu0 %v1929, 64
    %v1931 = vpop.permute.xlu0 %1930
    %v1933 = vrot.slane %v1922, 3
    %1934 = vrot.lane.b32.xlu0 %v1933, 96
    %v1935 = vpop.permute.xlu0 %1934
    %v1937 = vrot.slane %v1922, 4
    %v1939 = vrot.slane %v1922, 5
    %1940 = vrot.lane.b32.xlu0 %v1939, 32
    %v1941 = vpop.permute.xlu0 %1940
    %v1943 = vrot.slane %v1922, 6
    %1944 = vrot.lane.b32.xlu0 %v1943, 64
    %v1945 = vpop.permute.xlu0 %1944
    %v1947 = vrot.slane %v1922, 7
    %1948 = vrot.lane.b32.xlu0 %v1947, 96
    %v1949 = vpop.permute.xlu0 %1948
    %v1951 = vsel %vm68, %v1922, %v1927
    %v1952 = vsel %vm1840, %v1951, %v1931
    %vm1953 = vcmask 785408
    %v1954 = vsel %vm1953, %v1952, %v1935
    %v1955 = vsel %vm68, %v1937, %v1941
    %v1956 = vsel %vm1840, %v1955, %v1945
    %v1957 = vsel %vm1953, %v1956, %v1949
    %v1959 = vrot.slane %v1923, 1
    %1960 = vrot.lane.b32.xlu0 %v1959, 32
    %v1961 = vpop.permute.xlu0 %1960
    %v1963 = vrot.slane %v1923, 2
    %1964 = vrot.lane.b32.xlu0 %v1963, 64
    %v1965 = vpop.permute.xlu0 %1964
    %v1967 = vrot.slane %v1923, 3
    %1968 = vrot.lane.b32.xlu0 %v1967, 96
    %v1969 = vpop.permute.xlu0 %1968
    %v1971 = vrot.slane %v1923, 4
    %v1973 = vrot.slane %v1923, 5
    %1974 = vrot.lane.b32.xlu0 %v1973, 32
    %v1975 = vpop.permute.xlu0 %1974
    %v1977 = vrot.slane %v1923, 6
    %1978 = vrot.lane.b32.xlu0 %v1977, 64
    %v1979 = vpop.permute.xlu0 %1978
    %v1981 = vrot.slane %v1923, 7
    %1982 = vrot.lane.b32.xlu0 %v1981, 96
    %v1983 = vpop.permute.xlu0 %1982
    %v1985 = vsel %vm68, %v1923, %v1961
    %v1986 = vsel %vm1840, %v1985, %v1965
    %v1987 = vsel %vm1953, %v1986, %v1969
    %v1988 = vsel %vm68, %v1971, %v1975
    %v1989 = vsel %vm1840, %v1988, %v1979
    %v1990 = vsel %vm1953, %v1989, %v1983
    %v1995 = vcombine.low %v1954, %v1957
    %v1997 = vunpack.c.l.s4 1966171168
    %v1998 = vunpack.c.0.s8 %v1997
    %v1999 = vlaneseq
    %v2000 = vshrl.u32 %v1999, 7
    %v2001 = vsub.s32 %v1998, %v2000
    %v2002 = vrot.slane %v1995, %v2001
    %v2004 = vunpack.c.l.s4 1966171168
    %v2005 = vunpack.c.0.s8 %v2004
    %v2006 = vlaneseq
    %v2007 = vshrl.u32 %v2006, 7
    %v2008 = vsub.s32 %v2005, %v2007
    %v2009 = vrot.slane %v2002, %v2008
    %v2010 = vcombine.low %v1987, %v1990
    %v2012 = vunpack.c.l.s4 1966171168
    %v2013 = vunpack.c.0.s8 %v2012
    %v2014 = vlaneseq
    %v2015 = vshrl.u32 %v2014, 7
    %v2016 = vsub.s32 %v2013, %v2015
    %v2017 = vrot.slane %v2010, %v2016
    %v2019 = vunpack.c.l.s4 1966171168
    %v2020 = vunpack.c.0.s8 %v2019
    %v2021 = vlaneseq
    %v2022 = vshrl.u32 %v2021, 7
    %v2023 = vsub.s32 %v2020, %v2022
    %v2024 = vrot.slane %v2017, %v2023
    %v2027 = vlaneseq
    %vm2028 = vcmp.ge.s32.totalorder %v2027, 0
    %vm2029 = vcmp.lt.s32.totalorder %v2027, 256
    %vm2030 = vmand %vm2028, %vm2029
    %2031 = vst.msk [vmem:[#allocation5] sm:$0x3] %vm2030, %v2009
    %2032 = vst.msk [vmem:[#allocation5 + $0x2] sm:$0x3] %vm2030, %v2024
    // Predicated region
    $region62: #{tpu_custom_call.1} parent=1 // pred_check
      _
    $region63: #{tpu_custom_call.1} parent=1 // pred_check_branch
      %2034 = sbr.rel (0) target = $region65
    $region64: #{tpu_custom_call.1} parent=1 // pred_region
      %s2036 = ssub.s32 64, 64
      %2037 = vsyncadd [#allocation4], %s2036
      %s2038 = sshll.u32 [#allocation5], 4
      %s2039 = int_to_ptr.vmem [resolvable:$true] %s2038
      %2044 = dma.vmem_to_hbm [thread:$0]  %s2039, 64, %s14, [#allocation4], 32, 32, 2
    $region65: #{tpu_custom_call.1} parent=1 // pred_fallthru
      _
    // Predicated region
    $region66: #{tpu_custom_call.1} parent=1 // pred_check
      _
    $region67: #{tpu_custom_call.1} parent=1 // pred_check_branch
      %2046 = sbr.rel (0) target = $region69
    $region68: #{tpu_custom_call.1} parent=1 // pred_region
      %2047 = dma.done [#allocation4], 64
    $region69: #{tpu_custom_call.1} parent=1 // pred_fallthru
      _
    %2048 = vsyncpa [#allocation3], 1
    %2049 = vsyncpa [#allocation4], 1

</llo_original>
